<compile_context>
chip_gen: v7x
topology: tpu7x:2x2x1
jax: 0.10.0
libtpu: 0.0.40
codegen_flags: <defaults>
</compile_context>

<pallas_src>
import functools

import jax
import jax.numpy as jnp
from jax import lax
from jax.experimental import pallas as pl
from jax.experimental.pallas import tpu as pltpu


def _sinkhorn_kernel(x_ref, y_ref, out_ref, *, L, epsilon, matvec_dtype):
    x = x_ref[...].astype(jnp.float32)          # (N, D)
    y = y_ref[...].astype(jnp.float32)          # (M, D)
    n = x.shape[0]
    m = y.shape[0]

    # --- ground cost: squared Euclidean distance matrix (N, M), via the MXU ---
    x2 = jnp.sum(x * x, axis=1, keepdims=True)                        # (N, 1)
    y2 = jnp.sum(y * y, axis=1)[None, :]                              # (1, M)
    xyT = lax.dot_general(x, y, dimension_numbers=(((1,), (1,)), ((), ())),
                          preferred_element_type=jnp.float32)         # (N, M)
    cost = x2 + y2 - 2.0 * xyT

    # --- Gibbs kernel; fold -1/epsilon into one compile-time constant ---
    kmat = jnp.exp(cost * jnp.float32(-1.0 / epsilon))                # (N, M)
    kmatT = kmat.T                                                    # built ONCE

    # Optional narrow dtype for the MXU matvec operands (f32 accumulation).
    k_mm = kmat.astype(matvec_dtype)
    kT_mm = kmatT.astype(matvec_dtype)

    mu = jnp.float32(1.0 / n)
    nu = jnp.float32(1.0 / m)

    u0 = jnp.ones((1, n), jnp.float32)          # lane-major rows
    v0 = jnp.ones((1, m), jnp.float32)

    def body(_, carry):
        _, v_row = carry
        # u = mu / (K v)  ->  u_row = mu * recip(v_row @ K^T)
        kv = jnp.dot(v_row.astype(matvec_dtype), kT_mm,
                     preferred_element_type=jnp.float32)              # (1, N)
        u_row = mu * pl.reciprocal(kv)
        # v = nu / (K^T u)  ->  v_row = nu * recip(u_row @ K)   (no transpose)
        ku = jnp.dot(u_row.astype(matvec_dtype), k_mm,
                     preferred_element_type=jnp.float32)              # (1, M)
        v_row = nu * pl.reciprocal(ku)
        return (u_row, v_row)

    u_row, v_row = lax.fori_loop(0, L, body, (u0, v0), unroll=True)

    # --- loss = sum_ij C_ij * u_i * K_ij * v_j, without materializing gamma ---
    ck = (cost * kmat).astype(matvec_dtype)                           # (N, M)
    t_row = jnp.dot(u_row.astype(matvec_dtype), ck,
                    preferred_element_type=jnp.float32)               # (1, M)
    out_ref[0, 0] = jnp.sum(t_row * v_row)


def sinkhorn_loss_batched(x, y, *, L=10, epsilon=1.0, matvec_dtype=jnp.float32):
    """Batched Sinkhorn loss. x: (B, N, D), y: (B, M, D) -> (B,) f32 losses."""
    b, n, d = x.shape
    b2, m, d2 = y.shape
    assert b == b2 and d == d2, "batch / feature dims must match"

    kernel = functools.partial(_sinkhorn_kernel, L=int(L),
                               epsilon=float(epsilon), matvec_dtype=matvec_dtype)

    # VMEM sizing: live (N,M) f32 buffers (cost, K, K^T, C*K) + narrow matvec
    # copies + double-buffered x/y inputs, with headroom for small temporaries.
    itemsize = 4
    est = (4 * n * m * itemsize            # cost, kmat, kmatT, cost*kmat (f32)
           + 3 * n * m * 2                 # bf16 copies when matvec_dtype=bf16
           + 2 * 2 * (n + m) * d * itemsize  # double-buffered inputs
           + (2 << 20))                    # headroom (u/v rows, compiler temps)
    if est > (96 << 20):
        # TODO(synk): for point clouds this large, stream K from HBM
        # (memory_space=pl.ANY) and tile the two matvecs over M/N per iteration
        # (required below ~2.5K x 2.5K on v7x's 64 MiB VMEM).
        raise NotImplementedError("N*M too large for single-block Sinkhorn kernel")
    vmem_limit = int(min(max(est, 32 << 20), 96 << 20))

    out = pl.pallas_call(
        kernel,
        out_shape=jax.ShapeDtypeStruct((b, 1), jnp.float32),
        grid=(b,),
        in_specs=[
            pl.BlockSpec((None, n, d), lambda i: (i, 0, 0)),
            pl.BlockSpec((None, m, d), lambda i: (i, 0, 0)),
        ],
        out_specs=pl.BlockSpec((1, 1), lambda i: (i, 0),
                               memory_space=pltpu.MemorySpace.SMEM),
        compiler_params=pltpu.CompilerParams(
            dimension_semantics=("parallel",),
            vmem_limit_bytes=vmem_limit,
        ),
    )(x, y)
    return out[:, 0]


def sinkhorn_loss(x, y, *, L=10, epsilon=1.0, matvec_dtype=jnp.float32):
    """Pallas implementation of SinkhornLoss.forward(x, y). Returns a scalar.

    matvec_dtype=jnp.bfloat16 uses bf16 MXU operands (f32 accumulation) for the
    in-loop matvecs — recommended on v6e/v7x for large N, M.
    """
    losses = sinkhorn_loss_batched(x[None], y[None], L=L, epsilon=epsilon,
                                   matvec_dtype=matvec_dtype)
    return losses[0]


def _reference(x, y, L=10, epsilon=1.0):
    x = x.astype(jnp.float32)
    y = y.astype(jnp.float32)
    n, m = x.shape[0], y.shape[0]
    c = (jnp.sum(x * x, 1)[:, None] + jnp.sum(y * y, 1)[None, :]
         - 2.0 * x @ y.T)
    k = jnp.exp(-c / epsilon)
    u = jnp.ones((n,), jnp.float32)
    v = jnp.ones((m,), jnp.float32)
    for _ in range(L):
        u = (1.0 / n) / (k @ v)
        v = (1.0 / m) / (k.T @ u)
    gamma = u[:, None] * k * v[None, :]
    return jnp.sum(c * gamma)


if __name__ == "__main__":
    key = jax.random.PRNGKey(0)
    kx, ky = jax.random.split(key)
    N, M, D = 128, 128, 32
    x = jax.random.normal(kx, (N, D), dtype=jnp.float32)
    y = 0.5 * jax.random.normal(ky, (M, D), dtype=jnp.float32) + 0.25

    ref = jax.block_until_ready(_reference(x, y, L=10, epsilon=1.0))

    # f32 path (bit-faithful to the module semantics).
    loss = jax.block_until_ready(sinkhorn_loss(x, y, L=10, epsilon=1.0))
    assert jnp.isfinite(loss), "non-finite loss (f32)"
    assert jnp.allclose(loss, ref, rtol=1e-4, atol=1e-4), (loss, ref)

    # bf16-matvec path (v6e/v7x MXU-friendly); looser tolerance by design.
    loss_bf16 = jax.block_until_ready(
        sinkhorn_loss(x, y, L=10, epsilon=1.0, matvec_dtype=jnp.bfloat16))
    assert jnp.isfinite(loss_bf16), "non-finite loss (bf16 matvec)"
    assert jnp.allclose(loss_bf16, ref, rtol=5e-2, atol=5e-2), (loss_bf16, ref)

    # Batched path: exercises the "parallel" grid axis (both TCs on v7x).
    xb = jnp.stack([x, x * 0.9 + 0.1])
    yb = jnp.stack([y, y * 1.1 - 0.05])
    losses_b = jax.block_until_ready(sinkhorn_loss_batched(xb, yb, L=10, epsilon=1.0))
    refs_b = jnp.stack([_reference(xb[i], yb[i], L=10, epsilon=1.0) for i in range(2)])
    assert jnp.all(jnp.isfinite(losses_b)), "non-finite batched losses"
    assert jnp.allclose(losses_b, refs_b, rtol=1e-4, atol=1e-4), (losses_b, refs_b)

    print("KERNEL_OK")
</pallas_src>

<mosaic_0001>
module attributes {stable_mosaic.version = 11 : i64} {
  func.func @_sinkhorn_kernel(%arg0: i32, %arg1: memref<1x128x32xf32, #tpu.memory_space<vmem>>, %arg2: memref<1x128x32xf32, #tpu.memory_space<vmem>>, %arg3: memref<1x1xf32, #tpu.memory_space<smem>>) attributes {dimension_semantics = [#tpu.dimension_semantics<parallel>], iteration_bounds = array<i64: 1>, scalar_prefetch = 0 : i64, scratch_operands = 0 : i64, tpu.core_type = #tpu.core_type<tc>, window_params = [{transform_indices = @transform_0, window_bounds = array<i64: 1, 128, 32>}, {transform_indices = @transform_1, window_bounds = array<i64: 1, 128, 32>}, {transform_indices = @transform_2, window_bounds = array<i64: 1, 1>}]} {
    %c0 = arith.constant 0 : index
    %c0_0 = arith.constant 0 : index
    %c0_1 = arith.constant 0 : index
    %0 = vector.load %arg1[%c0, %c0_0, %c0_1] : memref<1x128x32xf32, #tpu.memory_space<vmem>>, vector<1x128x32xf32>
    %1 = vector.shape_cast %0 : vector<1x128x32xf32> to vector<128x32xf32>
    %c0_2 = arith.constant 0 : index
    %c0_3 = arith.constant 0 : index
    %c0_4 = arith.constant 0 : index
    %2 = vector.load %arg2[%c0_2, %c0_3, %c0_4] : memref<1x128x32xf32, #tpu.memory_space<vmem>>, vector<1x128x32xf32>
    %3 = vector.shape_cast %2 : vector<1x128x32xf32> to vector<128x32xf32>
    %4 = arith.mulf %1, %1 : vector<128x32xf32>
    %cst = arith.constant dense<0.000000e+00> : vector<128xf32>
    %5 = vector.multi_reduction <add>, %4, %cst [1] : vector<128x32xf32> to vector<128xf32>
    %6 = vector.shape_cast %5 : vector<128xf32> to vector<128x1xf32>
    %7 = arith.mulf %3, %3 : vector<128x32xf32>
    %cst_5 = arith.constant dense<0.000000e+00> : vector<128xf32>
    %8 = vector.multi_reduction <add>, %7, %cst_5 [1] : vector<128x32xf32> to vector<128xf32>
    %9 = vector.shape_cast %8 : vector<128xf32> to vector<1x128xf32>
    %cst_6 = arith.constant dense<0.000000e+00> : vector<128x128xf32>
    %10 = tpu.matmul %1, %3, %cst_6 {dimension_numbers = #tpu.dot_dimension_numbers<[1], [1], [0], [0], [0, 0, 1, 0], [], []>} : vector<128x32xf32>, vector<128x32xf32>, vector<128x128xf32> -> vector<128x128xf32>
    %11 = vector.broadcast %6 : vector<128x1xf32> to vector<128x128xf32>
    %12 = vector.broadcast %9 : vector<1x128xf32> to vector<128x128xf32>
    %13 = arith.addf %11, %12 : vector<128x128xf32>
    %cst_7 = arith.constant 2.000000e+00 : f32
    %14 = vector.broadcast %cst_7 : f32 to vector<128x128xf32>
    %15 = arith.mulf %14, %10 : vector<128x128xf32>
    %16 = arith.subf %13, %15 : vector<128x128xf32>
    %cst_8 = arith.constant -1.000000e+00 : f32
    %17 = vector.broadcast %cst_8 : f32 to vector<128x128xf32>
    %18 = arith.mulf %16, %17 : vector<128x128xf32>
    %19 = math.exp %18 : vector<128x128xf32>
    %20 = tpu.transpose %19, [1, 0] : vector<128x128xf32> -> vector<128x128xf32>
    %cst_9 = arith.constant 1.000000e+00 : f32
    %21 = vector.broadcast %cst_9 : f32 to vector<1x128xf32>
    %cst_10 = arith.constant 1.000000e+00 : f32
    %22 = vector.broadcast %cst_10 : f32 to vector<1x128xf32>
    %cst_11 = arith.constant 7.812500e-03 : f32
    %cst_12 = arith.constant 7.812500e-03 : f32
    %c0_i32 = arith.constant 0 : i32
    %cst_13 = arith.constant dense<0.000000e+00> : vector<1x128xf32>
    %23 = tpu.matmul %22, %20, %cst_13 {dimension_numbers = #tpu.dot_dimension_numbers<[1], [0], [0], [1], [0, 0, 1, 1], [], []>} : vector<1x128xf32>, vector<128x128xf32>, vector<1x128xf32> -> vector<1x128xf32>
    %24 = tpu.reciprocal %23 : vector<1x128xf32> -> vector<1x128xf32>
    %25 = vector.broadcast %cst_11 : f32 to vector<1x128xf32>
    %26 = arith.mulf %25, %24 : vector<1x128xf32>
    %cst_14 = arith.constant dense<0.000000e+00> : vector<1x128xf32>
    %27 = tpu.matmul %26, %19, %cst_14 {dimension_numbers = #tpu.dot_dimension_numbers<[1], [0], [0], [1], [0, 0, 1, 1], [], []>} : vector<1x128xf32>, vector<128x128xf32>, vector<1x128xf32> -> vector<1x128xf32>
    %28 = tpu.reciprocal %27 : vector<1x128xf32> -> vector<1x128xf32>
    %29 = vector.broadcast %cst_12 : f32 to vector<1x128xf32>
    %30 = arith.mulf %29, %28 : vector<1x128xf32>
    %c1_i32 = arith.constant 1 : i32
    %cst_15 = arith.constant dense<0.000000e+00> : vector<1x128xf32>
    %31 = tpu.matmul %30, %20, %cst_15 {dimension_numbers = #tpu.dot_dimension_numbers<[1], [0], [0], [1], [0, 0, 1, 1], [], []>} : vector<1x128xf32>, vector<128x128xf32>, vector<1x128xf32> -> vector<1x128xf32>
    %32 = tpu.reciprocal %31 : vector<1x128xf32> -> vector<1x128xf32>
    %33 = vector.broadcast %cst_11 : f32 to vector<1x128xf32>
    %34 = arith.mulf %33, %32 : vector<1x128xf32>
    %cst_16 = arith.constant dense<0.000000e+00> : vector<1x128xf32>
    %35 = tpu.matmul %34, %19, %cst_16 {dimension_numbers = #tpu.dot_dimension_numbers<[1], [0], [0], [1], [0, 0, 1, 1], [], []>} : vector<1x128xf32>, vector<128x128xf32>, vector<1x128xf32> -> vector<1x128xf32>
    %36 = tpu.reciprocal %35 : vector<1x128xf32> -> vector<1x128xf32>
    %37 = vector.broadcast %cst_12 : f32 to vector<1x128xf32>
    %38 = arith.mulf %37, %36 : vector<1x128xf32>
    %c2_i32 = arith.constant 2 : i32
    %cst_17 = arith.constant dense<0.000000e+00> : vector<1x128xf32>
    %39 = tpu.matmul %38, %20, %cst_17 {dimension_numbers = #tpu.dot_dimension_numbers<[1], [0], [0], [1], [0, 0, 1, 1], [], []>} : vector<1x128xf32>, vector<128x128xf32>, vector<1x128xf32> -> vector<1x128xf32>
    %40 = tpu.reciprocal %39 : vector<1x128xf32> -> vector<1x128xf32>
    %41 = vector.broadcast %cst_11 : f32 to vector<1x128xf32>
    %42 = arith.mulf %41, %40 : vector<1x128xf32>
    %cst_18 = arith.constant dense<0.000000e+00> : vector<1x128xf32>
    %43 = tpu.matmul %42, %19, %cst_18 {dimension_numbers = #tpu.dot_dimension_numbers<[1], [0], [0], [1], [0, 0, 1, 1], [], []>} : vector<1x128xf32>, vector<128x128xf32>, vector<1x128xf32> -> vector<1x128xf32>
    %44 = tpu.reciprocal %43 : vector<1x128xf32> -> vector<1x128xf32>
    %45 = vector.broadcast %cst_12 : f32 to vector<1x128xf32>
    %46 = arith.mulf %45, %44 : vector<1x128xf32>
    %c3_i32 = arith.constant 3 : i32
    %cst_19 = arith.constant dense<0.000000e+00> : vector<1x128xf32>
    %47 = tpu.matmul %46, %20, %cst_19 {dimension_numbers = #tpu.dot_dimension_numbers<[1], [0], [0], [1], [0, 0, 1, 1], [], []>} : vector<1x128xf32>, vector<128x128xf32>, vector<1x128xf32> -> vector<1x128xf32>
    %48 = tpu.reciprocal %47 : vector<1x128xf32> -> vector<1x128xf32>
    %49 = vector.broadcast %cst_11 : f32 to vector<1x128xf32>
    %50 = arith.mulf %49, %48 : vector<1x128xf32>
    %cst_20 = arith.constant dense<0.000000e+00> : vector<1x128xf32>
    %51 = tpu.matmul %50, %19, %cst_20 {dimension_numbers = #tpu.dot_dimension_numbers<[1], [0], [0], [1], [0, 0, 1, 1], [], []>} : vector<1x128xf32>, vector<128x128xf32>, vector<1x128xf32> -> vector<1x128xf32>
    %52 = tpu.reciprocal %51 : vector<1x128xf32> -> vector<1x128xf32>
    %53 = vector.broadcast %cst_12 : f32 to vector<1x128xf32>
    %54 = arith.mulf %53, %52 : vector<1x128xf32>
    %c4_i32 = arith.constant 4 : i32
    %cst_21 = arith.constant dense<0.000000e+00> : vector<1x128xf32>
    %55 = tpu.matmul %54, %20, %cst_21 {dimension_numbers = #tpu.dot_dimension_numbers<[1], [0], [0], [1], [0, 0, 1, 1], [], []>} : vector<1x128xf32>, vector<128x128xf32>, vector<1x128xf32> -> vector<1x128xf32>
    %56 = tpu.reciprocal %55 : vector<1x128xf32> -> vector<1x128xf32>
    %57 = vector.broadcast %cst_11 : f32 to vector<1x128xf32>
    %58 = arith.mulf %57, %56 : vector<1x128xf32>
    %cst_22 = arith.constant dense<0.000000e+00> : vector<1x128xf32>
    %59 = tpu.matmul %58, %19, %cst_22 {dimension_numbers = #tpu.dot_dimension_numbers<[1], [0], [0], [1], [0, 0, 1, 1], [], []>} : vector<1x128xf32>, vector<128x128xf32>, vector<1x128xf32> -> vector<1x128xf32>
    %60 = tpu.reciprocal %59 : vector<1x128xf32> -> vector<1x128xf32>
    %61 = vector.broadcast %cst_12 : f32 to vector<1x128xf32>
    %62 = arith.mulf %61, %60 : vector<1x128xf32>
    %c5_i32 = arith.constant 5 : i32
    %cst_23 = arith.constant dense<0.000000e+00> : vector<1x128xf32>
    %63 = tpu.matmul %62, %20, %cst_23 {dimension_numbers = #tpu.dot_dimension_numbers<[1], [0], [0], [1], [0, 0, 1, 1], [], []>} : vector<1x128xf32>, vector<128x128xf32>, vector<1x128xf32> -> vector<1x128xf32>
    %64 = tpu.reciprocal %63 : vector<1x128xf32> -> vector<1x128xf32>
    %65 = vector.broadcast %cst_11 : f32 to vector<1x128xf32>
    %66 = arith.mulf %65, %64 : vector<1x128xf32>
    %cst_24 = arith.constant dense<0.000000e+00> : vector<1x128xf32>
    %67 = tpu.matmul %66, %19, %cst_24 {dimension_numbers = #tpu.dot_dimension_numbers<[1], [0], [0], [1], [0, 0, 1, 1], [], []>} : vector<1x128xf32>, vector<128x128xf32>, vector<1x128xf32> -> vector<1x128xf32>
    %68 = tpu.reciprocal %67 : vector<1x128xf32> -> vector<1x128xf32>
    %69 = vector.broadcast %cst_12 : f32 to vector<1x128xf32>
    %70 = arith.mulf %69, %68 : vector<1x128xf32>
    %c6_i32 = arith.constant 6 : i32
    %cst_25 = arith.constant dense<0.000000e+00> : vector<1x128xf32>
    %71 = tpu.matmul %70, %20, %cst_25 {dimension_numbers = #tpu.dot_dimension_numbers<[1], [0], [0], [1], [0, 0, 1, 1], [], []>} : vector<1x128xf32>, vector<128x128xf32>, vector<1x128xf32> -> vector<1x128xf32>
    %72 = tpu.reciprocal %71 : vector<1x128xf32> -> vector<1x128xf32>
    %73 = vector.broadcast %cst_11 : f32 to vector<1x128xf32>
    %74 = arith.mulf %73, %72 : vector<1x128xf32>
    %cst_26 = arith.constant dense<0.000000e+00> : vector<1x128xf32>
    %75 = tpu.matmul %74, %19, %cst_26 {dimension_numbers = #tpu.dot_dimension_numbers<[1], [0], [0], [1], [0, 0, 1, 1], [], []>} : vector<1x128xf32>, vector<128x128xf32>, vector<1x128xf32> -> vector<1x128xf32>
    %76 = tpu.reciprocal %75 : vector<1x128xf32> -> vector<1x128xf32>
    %77 = vector.broadcast %cst_12 : f32 to vector<1x128xf32>
    %78 = arith.mulf %77, %76 : vector<1x128xf32>
    %c7_i32 = arith.constant 7 : i32
    %cst_27 = arith.constant dense<0.000000e+00> : vector<1x128xf32>
    %79 = tpu.matmul %78, %20, %cst_27 {dimension_numbers = #tpu.dot_dimension_numbers<[1], [0], [0], [1], [0, 0, 1, 1], [], []>} : vector<1x128xf32>, vector<128x128xf32>, vector<1x128xf32> -> vector<1x128xf32>
    %80 = tpu.reciprocal %79 : vector<1x128xf32> -> vector<1x128xf32>
    %81 = vector.broadcast %cst_11 : f32 to vector<1x128xf32>
    %82 = arith.mulf %81, %80 : vector<1x128xf32>
    %cst_28 = arith.constant dense<0.000000e+00> : vector<1x128xf32>
    %83 = tpu.matmul %82, %19, %cst_28 {dimension_numbers = #tpu.dot_dimension_numbers<[1], [0], [0], [1], [0, 0, 1, 1], [], []>} : vector<1x128xf32>, vector<128x128xf32>, vector<1x128xf32> -> vector<1x128xf32>
    %84 = tpu.reciprocal %83 : vector<1x128xf32> -> vector<1x128xf32>
    %85 = vector.broadcast %cst_12 : f32 to vector<1x128xf32>
    %86 = arith.mulf %85, %84 : vector<1x128xf32>
    %c8_i32 = arith.constant 8 : i32
    %cst_29 = arith.constant dense<0.000000e+00> : vector<1x128xf32>
    %87 = tpu.matmul %86, %20, %cst_29 {dimension_numbers = #tpu.dot_dimension_numbers<[1], [0], [0], [1], [0, 0, 1, 1], [], []>} : vector<1x128xf32>, vector<128x128xf32>, vector<1x128xf32> -> vector<1x128xf32>
    %88 = tpu.reciprocal %87 : vector<1x128xf32> -> vector<1x128xf32>
    %89 = vector.broadcast %cst_11 : f32 to vector<1x128xf32>
    %90 = arith.mulf %89, %88 : vector<1x128xf32>
    %cst_30 = arith.constant dense<0.000000e+00> : vector<1x128xf32>
    %91 = tpu.matmul %90, %19, %cst_30 {dimension_numbers = #tpu.dot_dimension_numbers<[1], [0], [0], [1], [0, 0, 1, 1], [], []>} : vector<1x128xf32>, vector<128x128xf32>, vector<1x128xf32> -> vector<1x128xf32>
    %92 = tpu.reciprocal %91 : vector<1x128xf32> -> vector<1x128xf32>
    %93 = vector.broadcast %cst_12 : f32 to vector<1x128xf32>
    %94 = arith.mulf %93, %92 : vector<1x128xf32>
    %c9_i32 = arith.constant 9 : i32
    %cst_31 = arith.constant dense<0.000000e+00> : vector<1x128xf32>
    %95 = tpu.matmul %94, %20, %cst_31 {dimension_numbers = #tpu.dot_dimension_numbers<[1], [0], [0], [1], [0, 0, 1, 1], [], []>} : vector<1x128xf32>, vector<128x128xf32>, vector<1x128xf32> -> vector<1x128xf32>
    %96 = tpu.reciprocal %95 : vector<1x128xf32> -> vector<1x128xf32>
    %97 = vector.broadcast %cst_11 : f32 to vector<1x128xf32>
    %98 = arith.mulf %97, %96 : vector<1x128xf32>
    %cst_32 = arith.constant dense<0.000000e+00> : vector<1x128xf32>
    %99 = tpu.matmul %98, %19, %cst_32 {dimension_numbers = #tpu.dot_dimension_numbers<[1], [0], [0], [1], [0, 0, 1, 1], [], []>} : vector<1x128xf32>, vector<128x128xf32>, vector<1x128xf32> -> vector<1x128xf32>
    %100 = tpu.reciprocal %99 : vector<1x128xf32> -> vector<1x128xf32>
    %101 = vector.broadcast %cst_12 : f32 to vector<1x128xf32>
    %102 = arith.mulf %101, %100 : vector<1x128xf32>
    %103 = arith.mulf %16, %19 : vector<128x128xf32>
    %cst_33 = arith.constant dense<0.000000e+00> : vector<1x128xf32>
    %104 = tpu.matmul %98, %103, %cst_33 {dimension_numbers = #tpu.dot_dimension_numbers<[1], [0], [0], [1], [0, 0, 1, 1], [], []>} : vector<1x128xf32>, vector<128x128xf32>, vector<1x128xf32> -> vector<1x128xf32>
    %105 = arith.mulf %104, %102 : vector<1x128xf32>
    %106 = vector.shape_cast %105 : vector<1x128xf32> to vector<1x1x128xf32>
    %cst_34 = arith.constant dense<0.000000e+00> : vector<1xf32>
    %107 = vector.multi_reduction <add>, %106, %cst_34 [1, 2] : vector<1x1x128xf32> to vector<1xf32>
    %108 = vector.shape_cast %107 : vector<1xf32> to vector<1x1x1xf32>
    %109 = vector.extract %108[0, 0, 0] : f32 from vector<1x1x1xf32>
    %c0_35 = arith.constant 0 : index
    %c0_36 = arith.constant 0 : index
    %110 = memref.load %arg3[%c0_35, %c0_36] : memref<1x1xf32, #tpu.memory_space<smem>>
    memref.store %109, %arg3[%c0_35, %c0_36] : memref<1x1xf32, #tpu.memory_space<smem>>
    return
  }
  func.func @transform_0(%arg0: i32) -> (i32, i32, i32) {
    %c0_i32 = arith.constant 0 : i32
    %c0_i32_0 = arith.constant 0 : i32
    %c0_i32_1 = arith.constant 0 : i32
    return %arg0, %c0_i32, %c0_i32_0 : i32, i32, i32
  }
  func.func @transform_1(%arg0: i32) -> (i32, i32, i32) {
    %c0_i32 = arith.constant 0 : i32
    %c0_i32_0 = arith.constant 0 : i32
    %c0_i32_1 = arith.constant 0 : i32
    return %arg0, %c0_i32, %c0_i32_0 : i32, i32, i32
  }
  func.func @transform_2(%arg0: i32) -> (i32, i32) {
    %c0_i32 = arith.constant 0 : i32
    %c0_i32_0 = arith.constant 0 : i32
    return %arg0, %c0_i32 : i32, i32
  }
}

</mosaic_0001>

<llo_original>
// kernel: tpu_custom_call.1
$region0: #{tpu_custom_call.1}
  #allocation0 [shape = 'u32[]', space=smem, size = 0x4, offset = 0x4, fixed_abs, tag = 'smem constant byte address 0x4 - core index']
  #allocation1 [shape = 'u32[144,128]{1,0:T(1,128)}', space=vmem, size = 0x12000, scoped, tag = 'internal scratch']
  %s0 = inlined_call_operand.vmem [shape: f32[1,128,32], index: 0, kind: input, shape index: {}]
  %s1 = inlined_call_operand.vmem [shape: f32[1,128,32], index: 1, kind: input, shape index: {}]
  %s2 = inlined_call_operand.hbm [shape: f32[1,1], index: 2, kind: output, shape index: {}]
  %s3 = sld [smem:[#allocation0]]
  $region18: #{tpu_custom_call.1} parent=0
    _
  %s5 = ssub.s32 1, %s3
  %s6 = scalar_select 0, %s5, %s3
  $region1: #{tpu_custom_call.1} parent=0
    #allocation2 [shape = 'u8[512]{0}', space=smem, size = 0x200, scoped, tag = 'output window, operand 0, single buffered']
    #allocation3 [shape = 's32[1]{0}', space=sflag, size = 0x4, scoped, tag = 'scoped memory for tpu_custom_call.1']
    %7 = vsyncpa [#allocation3], 0
    // Predicated region
    $region2: #{tpu_custom_call.1} parent=1 // pred_check
      _
    $region3: #{tpu_custom_call.1} parent=1 // pred_check_branch
      %9 = sbr.rel (0) target = $region5
    $region4: #{tpu_custom_call.1} parent=1 // pred_region
      _
    $region5: #{tpu_custom_call.1} parent=1 // pred_fallthru
      _
    // Predicated region
    $region6: #{tpu_custom_call.1} parent=1 // pred_check
      _
    $region7: #{tpu_custom_call.1} parent=1 // pred_check_branch
      %11 = sbr.rel (0) target = $region9
    $region8: #{tpu_custom_call.1} parent=1 // pred_region
      _
    $region9: #{tpu_custom_call.1} parent=1 // pred_fallthru
      _
    %v12 = vld [vmem:[%s0] sm:$0xff]
    %v13 = vld [vmem:[%s0 + $0x8] sm:$0xff]
    %v14 = vld [vmem:[%s0 + $0x10] sm:$0xff]
    %v15 = vld [vmem:[%s0 + $0x18] sm:$0xff]
    %v16 = vld [vmem:[%s0 + $0x20] sm:$0xff]
    %v17 = vld [vmem:[%s0 + $0x28] sm:$0xff]
    %v18 = vld [vmem:[%s0 + $0x30] sm:$0xff]
    %v19 = vld [vmem:[%s0 + $0x38] sm:$0xff]
    %v20 = vld [vmem:[%s0 + $0x40] sm:$0xff]
    %v21 = vld [vmem:[%s0 + $0x48] sm:$0xff]
    %v22 = vld [vmem:[%s0 + $0x50] sm:$0xff]
    %v23 = vld [vmem:[%s0 + $0x58] sm:$0xff]
    %v24 = vld [vmem:[%s0 + $0x60] sm:$0xff]
    %v25 = vld [vmem:[%s0 + $0x68] sm:$0xff]
    %v26 = vld [vmem:[%s0 + $0x70] sm:$0xff]
    %v27 = vld [vmem:[%s0 + $0x78] sm:$0xff]
    %v28 = vld [vmem:[%s1] sm:$0xff]
    %v29 = vld [vmem:[%s1 + $0x8] sm:$0xff]
    %v30 = vld [vmem:[%s1 + $0x10] sm:$0xff]
    %v31 = vld [vmem:[%s1 + $0x18] sm:$0xff]
    %v32 = vld [vmem:[%s1 + $0x20] sm:$0xff]
    %v33 = vld [vmem:[%s1 + $0x28] sm:$0xff]
    %v34 = vld [vmem:[%s1 + $0x30] sm:$0xff]
    %v35 = vld [vmem:[%s1 + $0x38] sm:$0xff]
    %v36 = vld [vmem:[%s1 + $0x40] sm:$0xff]
    %v37 = vld [vmem:[%s1 + $0x48] sm:$0xff]
    %v38 = vld [vmem:[%s1 + $0x50] sm:$0xff]
    %v39 = vld [vmem:[%s1 + $0x58] sm:$0xff]
    %v40 = vld [vmem:[%s1 + $0x60] sm:$0xff]
    %v41 = vld [vmem:[%s1 + $0x68] sm:$0xff]
    %v42 = vld [vmem:[%s1 + $0x70] sm:$0xff]
    %v43 = vld [vmem:[%s1 + $0x78] sm:$0xff]
    %v44 = vmul.f32 %v12, %v12
    %v45 = vmul.f32 %v13, %v13
    %v46 = vmul.f32 %v14, %v14
    %v47 = vmul.f32 %v15, %v15
    %v48 = vmul.f32 %v16, %v16
    %v49 = vmul.f32 %v17, %v17
    %v50 = vmul.f32 %v18, %v18
    %v51 = vmul.f32 %v19, %v19
    %v52 = vmul.f32 %v20, %v20
    %v53 = vmul.f32 %v21, %v21
    %v54 = vmul.f32 %v22, %v22
    %v55 = vmul.f32 %v23, %v23
    %v56 = vmul.f32 %v24, %v24
    %v57 = vmul.f32 %v25, %v25
    %v58 = vmul.f32 %v26, %v26
    %v59 = vmul.f32 %v27, %v27
    %vm60 = vcmask 261120
    %v61 = vsel %vm60, %v44, 0.0
    %62 = vadd.xlane.f32.xlu0 %v61
    %v63 = vpop.xlane.xlu0 %62
    %v64 = vsel %vm60, %v45, 0.0
    %65 = vadd.xlane.f32.xlu0 %v64
    %v66 = vpop.xlane.xlu0 %65
    %v67 = vsel %vm60, %v46, 0.0
    %68 = vadd.xlane.f32.xlu0 %v67
    %v69 = vpop.xlane.xlu0 %68
    %v70 = vsel %vm60, %v47, 0.0
    %71 = vadd.xlane.f32.xlu0 %v70
    %v72 = vpop.xlane.xlu0 %71
    %v73 = vsel %vm60, %v48, 0.0
    %74 = vadd.xlane.f32.xlu0 %v73
    %v75 = vpop.xlane.xlu0 %74
    %v76 = vsel %vm60, %v49, 0.0
    %77 = vadd.xlane.f32.xlu0 %v76
    %v78 = vpop.xlane.xlu0 %77
    %v79 = vsel %vm60, %v50, 0.0
    %80 = vadd.xlane.f32.xlu0 %v79
    %v81 = vpop.xlane.xlu0 %80
    %v82 = vsel %vm60, %v51, 0.0
    %83 = vadd.xlane.f32.xlu0 %v82
    %v84 = vpop.xlane.xlu0 %83
    %v85 = vsel %vm60, %v52, 0.0
    %86 = vadd.xlane.f32.xlu0 %v85
    %v87 = vpop.xlane.xlu0 %86
    %v88 = vsel %vm60, %v53, 0.0
    %89 = vadd.xlane.f32.xlu0 %v88
    %v90 = vpop.xlane.xlu0 %89
    %v91 = vsel %vm60, %v54, 0.0
    %92 = vadd.xlane.f32.xlu0 %v91
    %v93 = vpop.xlane.xlu0 %92
    %v94 = vsel %vm60, %v55, 0.0
    %95 = vadd.xlane.f32.xlu0 %v94
    %v96 = vpop.xlane.xlu0 %95
    %v97 = vsel %vm60, %v56, 0.0
    %98 = vadd.xlane.f32.xlu0 %v97
    %v99 = vpop.xlane.xlu0 %98
    %v100 = vsel %vm60, %v57, 0.0
    %101 = vadd.xlane.f32.xlu0 %v100
    %v102 = vpop.xlane.xlu0 %101
    %v103 = vsel %vm60, %v58, 0.0
    %104 = vadd.xlane.f32.xlu0 %v103
    %v105 = vpop.xlane.xlu0 %104
    %v106 = vsel %vm60, %v59, 0.0
    %107 = vadd.xlane.f32.xlu0 %v106
    %v108 = vpop.xlane.xlu0 %107
    %v109 = vmul.f32 %v28, %v28
    %v110 = vmul.f32 %v29, %v29
    %v111 = vmul.f32 %v30, %v30
    %v112 = vmul.f32 %v31, %v31
    %v113 = vmul.f32 %v32, %v32
    %v114 = vmul.f32 %v33, %v33
    %v115 = vmul.f32 %v34, %v34
    %v116 = vmul.f32 %v35, %v35
    %v117 = vmul.f32 %v36, %v36
    %v118 = vmul.f32 %v37, %v37
    %v119 = vmul.f32 %v38, %v38
    %v120 = vmul.f32 %v39, %v39
    %v121 = vmul.f32 %v40, %v40
    %v122 = vmul.f32 %v41, %v41
    %v123 = vmul.f32 %v42, %v42
    %v124 = vmul.f32 %v43, %v43
    %v125 = vsel %vm60, %v109, 0.0
    %126 = vadd.xlane.f32.xlu0 %v125
    %v127 = vpop.xlane.xlu0 %126
    %v128 = vsel %vm60, %v110, 0.0
    %129 = vadd.xlane.f32.xlu0 %v128
    %v130 = vpop.xlane.xlu0 %129
    %v131 = vsel %vm60, %v111, 0.0
    %132 = vadd.xlane.f32.xlu0 %v131
    %v133 = vpop.xlane.xlu0 %132
    %v134 = vsel %vm60, %v112, 0.0
    %135 = vadd.xlane.f32.xlu0 %v134
    %v136 = vpop.xlane.xlu0 %135
    %v137 = vsel %vm60, %v113, 0.0
    %138 = vadd.xlane.f32.xlu0 %v137
    %v139 = vpop.xlane.xlu0 %138
    %v140 = vsel %vm60, %v114, 0.0
    %141 = vadd.xlane.f32.xlu0 %v140
    %v142 = vpop.xlane.xlu0 %141
    %v143 = vsel %vm60, %v115, 0.0
    %144 = vadd.xlane.f32.xlu0 %v143
    %v145 = vpop.xlane.xlu0 %144
    %v146 = vsel %vm60, %v116, 0.0
    %147 = vadd.xlane.f32.xlu0 %v146
    %v148 = vpop.xlane.xlu0 %147
    %v149 = vsel %vm60, %v117, 0.0
    %150 = vadd.xlane.f32.xlu0 %v149
    %v151 = vpop.xlane.xlu0 %150
    %v152 = vsel %vm60, %v118, 0.0
    %153 = vadd.xlane.f32.xlu0 %v152
    %v154 = vpop.xlane.xlu0 %153
    %v155 = vsel %vm60, %v119, 0.0
    %156 = vadd.xlane.f32.xlu0 %v155
    %v157 = vpop.xlane.xlu0 %156
    %v158 = vsel %vm60, %v120, 0.0
    %159 = vadd.xlane.f32.xlu0 %v158
    %v160 = vpop.xlane.xlu0 %159
    %v161 = vsel %vm60, %v121, 0.0
    %162 = vadd.xlane.f32.xlu0 %v161
    %v163 = vpop.xlane.xlu0 %162
    %v164 = vsel %vm60, %v122, 0.0
    %165 = vadd.xlane.f32.xlu0 %v164
    %v166 = vpop.xlane.xlu0 %165
    %v167 = vsel %vm60, %v123, 0.0
    %168 = vadd.xlane.f32.xlu0 %v167
    %v169 = vpop.xlane.xlu0 %168
    %v170 = vsel %vm60, %v124, 0.0
    %171 = vadd.xlane.f32.xlu0 %v170
    %v172 = vpop.xlane.xlu0 %171
    %v174 = vsel %vm60, %v12, 0
    %v177 = vsel %vm60, %v13, 0
    %v180 = vsel %vm60, %v14, 0
    %v183 = vsel %vm60, %v15, 0
    %v186 = vsel %vm60, %v16, 0
    %v189 = vsel %vm60, %v17, 0
    %v192 = vsel %vm60, %v18, 0
    %v195 = vsel %vm60, %v19, 0
    %v198 = vsel %vm60, %v20, 0
    %v201 = vsel %vm60, %v21, 0
    %v204 = vsel %vm60, %v22, 0
    %v207 = vsel %vm60, %v23, 0
    %v210 = vsel %vm60, %v24, 0
    %v213 = vsel %vm60, %v25, 0
    %v216 = vsel %vm60, %v26, 0
    %v219 = vsel %vm60, %v27, 0
    %v222 = vsel %vm60, %v28, 0
    %v225 = vsel %vm60, %v29, 0
    %v228 = vsel %vm60, %v30, 0
    %v231 = vsel %vm60, %v31, 0
    %v234 = vsel %vm60, %v32, 0
    %v237 = vsel %vm60, %v33, 0
    %v240 = vsel %vm60, %v34, 0
    %v243 = vsel %vm60, %v35, 0
    %v246 = vsel %vm60, %v36, 0
    %v249 = vsel %vm60, %v37, 0
    %v252 = vsel %vm60, %v38, 0
    %v255 = vsel %vm60, %v39, 0
    %v258 = vsel %vm60, %v40, 0
    %v261 = vsel %vm60, %v41, 0
    %v264 = vsel %vm60, %v42, 0
    %v267 = vsel %vm60, %v43, 0
    %269 = vmatprep.subr.mxu0 0.0
    %270 = vmatpush1.xpose.msra.mxu0 %v222
    %271 = vmatprep.subr.mxu0 0.0
    %272 = vmatpush1.xpose.msra.mxu0 %v225
    %273 = vmatprep.subr.mxu0 0.0
    %274 = vmatpush1.xpose.msra.mxu0 %v228
    %275 = vmatprep.subr.mxu0 0.0
    %276 = vmatpush1.xpose.msra.mxu0 %v231
    %277 = vmatprep.subr.mxu0 0.0
    %278 = vmatpush1.xpose.msra.mxu0 %v234
    %279 = vmatprep.subr.mxu0 0.0
    %280 = vmatpush1.xpose.msra.mxu0 %v237
    %281 = vmatprep.subr.mxu0 0.0
    %282 = vmatpush1.xpose.msra.mxu0 %v240
    %283 = vmatprep.subr.mxu0 0.0
    %284 = vmatpush1.xpose.msra.mxu0 %v243
    %285 = vmatprep.subr.mxu0 0.0
    %286 = vmatpush1.xpose.msra.mxu0 %v246
    %287 = vmatprep.subr.mxu0 0.0
    %288 = vmatpush1.xpose.msra.mxu0 %v249
    %289 = vmatprep.subr.mxu0 0.0
    %290 = vmatpush1.xpose.msra.mxu0 %v252
    %291 = vmatprep.subr.mxu0 0.0
    %292 = vmatpush1.xpose.msra.mxu0 %v255
    %293 = vmatprep.subr.mxu0 0.0
    %294 = vmatpush1.xpose.msra.mxu0 %v258
    %295 = vmatprep.subr.mxu0 0.0
    %296 = vmatpush1.xpose.msra.mxu0 %v261
    %297 = vmatprep.subr.mxu0 0.0
    %298 = vmatpush1.xpose.msra.mxu0 %v264
    %299 = vmatprep.subr.mxu0 0.0
    %300 = vmatpush1.xpose.msra.mxu0 %v267
    %301 = vmatprep.subr.mxu0 0.0
    %302 = vmatpush1.xpose.msra.mxu0 0.0
    %303 = vmatprep.subr.mxu0 0.0
    %304 = vmatpush1.xpose.msra.mxu0 0.0
    %305 = vmatprep.subr.mxu0 0.0
    %306 = vmatpush1.xpose.msra.mxu0 0.0
    %307 = vmatprep.subr.mxu0 0.0
    %308 = vmatpush1.xpose.msra.mxu0 0.0
    %309 = vmatprep.subr.mxu0 0.0
    %310 = vmatpush1.xpose.msra.mxu0 0.0
    %311 = vmatprep.subr.mxu0 0.0
    %312 = vmatpush1.xpose.msra.mxu0 0.0
    %313 = vmatprep.subr.mxu0 0.0
    %314 = vmatpush1.xpose.msra.mxu0 0.0
    %315 = vmatprep.subr.mxu0 0.0
    %316 = vmatpush1.xpose.msra.mxu0 0.0
    %317 = vmatprep.subr.mxu0 0.0
    %318 = vmatpush1.xpose.msra.mxu0 0.0
    %319 = vmatprep.subr.mxu0 0.0
    %320 = vmatpush1.xpose.msra.mxu0 0.0
    %321 = vmatprep.subr.mxu0 0.0
    %322 = vmatpush1.xpose.msra.mxu0 0.0
    %323 = vmatprep.subr.mxu0 0.0
    %324 = vmatpush1.xpose.msra.mxu0 0.0
    %325 = vmatprep.subr.mxu0 0.0
    %326 = vmatpush1.xpose.msra.mxu0 0.0
    %327 = vmatprep.subr.mxu0 0.0
    %328 = vmatpush1.xpose.msra.mxu0 0.0
    %329 = vmatprep.subr.mxu0 0.0
    %330 = vmatpush1.xpose.msra.mxu0 0.0
    %331 = vmatprep.subr.mxu0 0.0
    %332 = vmatpush1.xpose.msra.mxu0 0.0
    %333 = vmatprep.mubr.f32.mxu0 0.0
    %334 = vmatmul.mubr.f32.gmra.mrb[0].mxu0 %v174
    %v335 = vpop.f32.mrb[0].mxu0
    %v336 = vadd.f32 0.0, %v335
    %v337 = vpop.f32.mrb[0].mxu0
    %338 = vmatprep.mubr.f32.mxu0 0.0
    %339 = vmatmul.mubr.f32.gmra.mrb[0].mxu0 %v177
    %v340 = vpop.f32.mrb[0].mxu0
    %v341 = vadd.f32 0.0, %v340
    %v342 = vpop.f32.mrb[0].mxu0
    %343 = vmatprep.mubr.f32.mxu0 0.0
    %344 = vmatmul.mubr.f32.gmra.mrb[0].mxu0 %v180
    %v345 = vpop.f32.mrb[0].mxu0
    %v346 = vadd.f32 0.0, %v345
    %v347 = vpop.f32.mrb[0].mxu0
    %348 = vmatprep.mubr.f32.mxu0 0.0
    %349 = vmatmul.mubr.f32.gmra.mrb[0].mxu0 %v183
    %v350 = vpop.f32.mrb[0].mxu0
    %v351 = vadd.f32 0.0, %v350
    %v352 = vpop.f32.mrb[0].mxu0
    %353 = vmatprep.mubr.f32.mxu0 0.0
    %354 = vmatmul.mubr.f32.gmra.mrb[0].mxu0 %v186
    %v355 = vpop.f32.mrb[0].mxu0
    %v356 = vadd.f32 0.0, %v355
    %v357 = vpop.f32.mrb[0].mxu0
    %358 = vmatprep.mubr.f32.mxu0 0.0
    %359 = vmatmul.mubr.f32.gmra.mrb[0].mxu0 %v189
    %v360 = vpop.f32.mrb[0].mxu0
    %v361 = vadd.f32 0.0, %v360
    %v362 = vpop.f32.mrb[0].mxu0
    %363 = vmatprep.mubr.f32.mxu0 0.0
    %364 = vmatmul.mubr.f32.gmra.mrb[0].mxu0 %v192
    %v365 = vpop.f32.mrb[0].mxu0
    %v366 = vadd.f32 0.0, %v365
    %v367 = vpop.f32.mrb[0].mxu0
    %368 = vmatprep.mubr.f32.mxu0 0.0
    %369 = vmatmul.mubr.f32.gmra.mrb[0].mxu0 %v195
    %v370 = vpop.f32.mrb[0].mxu0
    %v371 = vadd.f32 0.0, %v370
    %v372 = vpop.f32.mrb[0].mxu0
    %373 = vmatprep.mubr.f32.mxu0 0.0
    %374 = vmatmul.mubr.f32.gmra.mrb[0].mxu0 %v198
    %v375 = vpop.f32.mrb[0].mxu0
    %v376 = vadd.f32 0.0, %v375
    %v377 = vpop.f32.mrb[0].mxu0
    %378 = vmatprep.mubr.f32.mxu0 0.0
    %379 = vmatmul.mubr.f32.gmra.mrb[0].mxu0 %v201
    %v380 = vpop.f32.mrb[0].mxu0
    %v381 = vadd.f32 0.0, %v380
    %v382 = vpop.f32.mrb[0].mxu0
    %383 = vmatprep.mubr.f32.mxu0 0.0
    %384 = vmatmul.mubr.f32.gmra.mrb[0].mxu0 %v204
    %v385 = vpop.f32.mrb[0].mxu0
    %v386 = vadd.f32 0.0, %v385
    %v387 = vpop.f32.mrb[0].mxu0
    %388 = vmatprep.mubr.f32.mxu0 0.0
    %389 = vmatmul.mubr.f32.gmra.mrb[0].mxu0 %v207
    %v390 = vpop.f32.mrb[0].mxu0
    %v391 = vadd.f32 0.0, %v390
    %v392 = vpop.f32.mrb[0].mxu0
    %393 = vmatprep.mubr.f32.mxu0 0.0
    %394 = vmatmul.mubr.f32.gmra.mrb[0].mxu0 %v210
    %v395 = vpop.f32.mrb[0].mxu0
    %v396 = vadd.f32 0.0, %v395
    %v397 = vpop.f32.mrb[0].mxu0
    %398 = vmatprep.mubr.f32.mxu0 0.0
    %399 = vmatmul.mubr.f32.gmra.mrb[0].mxu0 %v213
    %v400 = vpop.f32.mrb[0].mxu0
    %v401 = vadd.f32 0.0, %v400
    %v402 = vpop.f32.mrb[0].mxu0
    %403 = vmatprep.mubr.f32.mxu0 0.0
    %404 = vmatmul.mubr.f32.gmra.mrb[0].mxu0 %v216
    %v405 = vpop.f32.mrb[0].mxu0
    %v406 = vadd.f32 0.0, %v405
    %v407 = vpop.f32.mrb[0].mxu0
    %408 = vmatprep.mubr.f32.mxu0 0.0
    %409 = vmatmul.mubr.f32.gmra.mrb[0].mxu0 %v219
    %v410 = vpop.f32.mrb[0].mxu0
    %v411 = vadd.f32 0.0, %v410
    %v412 = vpop.f32.mrb[0].mxu0
    %413 = vdwg.mxu0
    %v430 = vlaneseq
    %v431 = vand.u32 %v430, 127
    %v432 = vlaneseq
    %v433 = vshrl.u32 %v432, 7
    %v434 = vsub.s32 %v431, %v433
    %v435 = vrot.slane %v127, %v434
    %v436 = vadd.s32 %v431, 4294967288
    %v437 = vlaneseq
    %v438 = vshrl.u32 %v437, 7
    %v439 = vsub.s32 %v436, %v438
    %v440 = vrot.slane %v130, %v439
    %vm441 = vcmask 130112
    %v442 = vsel %vm441, %v440, %v435
    %v443 = vadd.s32 %v431, 4294967280
    %v444 = vlaneseq
    %v445 = vshrl.u32 %v444, 7
    %v446 = vsub.s32 %v443, %v445
    %v447 = vrot.slane %v133, %v446
    %vm448 = vcmask 195712
    %v449 = vsel %vm448, %v447, %v442
    %v450 = vadd.s32 %v431, 4294967272
    %v451 = vlaneseq
    %v452 = vshrl.u32 %v451, 7
    %v453 = vsub.s32 %v450, %v452
    %v454 = vrot.slane %v136, %v453
    %vm455 = vcmask 261312
    %v456 = vsel %vm455, %v454, %v449
    %v457 = vadd.s32 %v431, 4294967264
    %v458 = vlaneseq
    %v459 = vshrl.u32 %v458, 7
    %v460 = vsub.s32 %v457, %v459
    %v461 = vrot.slane %v139, %v460
    %vm462 = vcmask 326912
    %v463 = vsel %vm462, %v461, %v456
    %v464 = vadd.s32 %v431, 4294967256
    %v465 = vlaneseq
    %v466 = vshrl.u32 %v465, 7
    %v467 = vsub.s32 %v464, %v466
    %v468 = vrot.slane %v142, %v467
    %vm469 = vcmask 392512
    %v470 = vsel %vm469, %v468, %v463
    %v471 = vadd.s32 %v431, 4294967248
    %v472 = vlaneseq
    %v473 = vshrl.u32 %v472, 7
    %v474 = vsub.s32 %v471, %v473
    %v475 = vrot.slane %v145, %v474
    %vm476 = vcmask 458112
    %v477 = vsel %vm476, %v475, %v470
    %v478 = vadd.s32 %v431, 4294967240
    %v479 = vlaneseq
    %v480 = vshrl.u32 %v479, 7
    %v481 = vsub.s32 %v478, %v480
    %v482 = vrot.slane %v148, %v481
    %vm483 = vcmask 523712
    %v484 = vsel %vm483, %v482, %v477
    %v485 = vadd.s32 %v431, 4294967232
    %v486 = vlaneseq
    %v487 = vshrl.u32 %v486, 7
    %v488 = vsub.s32 %v485, %v487
    %v489 = vrot.slane %v151, %v488
    %vm490 = vcmask 589312
    %v491 = vsel %vm490, %v489, %v484
    %v492 = vadd.s32 %v431, 4294967224
    %v493 = vlaneseq
    %v494 = vshrl.u32 %v493, 7
    %v495 = vsub.s32 %v492, %v494
    %v496 = vrot.slane %v154, %v495
    %vm497 = vcmask 654912
    %v498 = vsel %vm497, %v496, %v491
    %v499 = vadd.s32 %v431, 4294967216
    %v500 = vlaneseq
    %v501 = vshrl.u32 %v500, 7
    %v502 = vsub.s32 %v499, %v501
    %v503 = vrot.slane %v157, %v502
    %vm504 = vcmask 720512
    %v505 = vsel %vm504, %v503, %v498
    %v506 = vadd.s32 %v431, 4294967208
    %v507 = vlaneseq
    %v508 = vshrl.u32 %v507, 7
    %v509 = vsub.s32 %v506, %v508
    %v510 = vrot.slane %v160, %v509
    %vm511 = vcmask 786112
    %v512 = vsel %vm511, %v510, %v505
    %v513 = vadd.s32 %v431, 4294967200
    %v514 = vlaneseq
    %v515 = vshrl.u32 %v514, 7
    %v516 = vsub.s32 %v513, %v515
    %v517 = vrot.slane %v163, %v516
    %vm518 = vcmask 851712
    %v519 = vsel %vm518, %v517, %v512
    %v520 = vadd.s32 %v431, 4294967192
    %v521 = vlaneseq
    %v522 = vshrl.u32 %v521, 7
    %v523 = vsub.s32 %v520, %v522
    %v524 = vrot.slane %v166, %v523
    %vm525 = vcmask 917312
    %v526 = vsel %vm525, %v524, %v519
    %v527 = vadd.s32 %v431, 4294967184
    %v528 = vlaneseq
    %v529 = vshrl.u32 %v528, 7
    %v530 = vsub.s32 %v527, %v529
    %v531 = vrot.slane %v169, %v530
    %vm532 = vcmask 982912
    %v533 = vsel %vm532, %v531, %v526
    %v534 = vadd.s32 %v431, 4294967176
    %v535 = vlaneseq
    %v536 = vshrl.u32 %v535, 7
    %v537 = vsub.s32 %v534, %v536
    %v538 = vrot.slane %v172, %v537
    %vm539 = vcmask 1048512
    %v540 = vsel %vm539, %v538, %v533
    %vm541 = vcmask 1042434
    %v542 = vsel %vm541, %v540, %v540
    %vm543 = vcmask 1043459
    %v544 = vsel %vm543, %v540, %v542
    %vm545 = vcmask 1044484
    %v546 = vsel %vm545, %v540, %v544
    %vm547 = vcmask 1045509
    %v548 = vsel %vm547, %v540, %v546
    %vm549 = vcmask 1046534
    %v550 = vsel %vm549, %v540, %v548
    %vm551 = vcmask 1047559
    %v552 = vsel %vm551, %v540, %v550
    %v554 = vadd.f32 %v63, %v552
    %v555 = vadd.f32 %v66, %v552
    %v556 = vadd.f32 %v69, %v552
    %v557 = vadd.f32 %v72, %v552
    %v558 = vadd.f32 %v75, %v552
    %v559 = vadd.f32 %v78, %v552
    %v560 = vadd.f32 %v81, %v552
    %v561 = vadd.f32 %v84, %v552
    %v562 = vadd.f32 %v87, %v552
    %v563 = vadd.f32 %v90, %v552
    %v564 = vadd.f32 %v93, %v552
    %v565 = vadd.f32 %v96, %v552
    %v566 = vadd.f32 %v99, %v552
    %v567 = vadd.f32 %v102, %v552
    %v568 = vadd.f32 %v105, %v552
    %v569 = vadd.f32 %v108, %v552
    %v570 = vmul.f32 %v336, 2.0
    %v571 = vmul.f32 %v341, 2.0
    %v572 = vmul.f32 %v346, 2.0
    %v573 = vmul.f32 %v351, 2.0
    %v574 = vmul.f32 %v356, 2.0
    %v575 = vmul.f32 %v361, 2.0
    %v576 = vmul.f32 %v366, 2.0
    %v577 = vmul.f32 %v371, 2.0
    %v578 = vmul.f32 %v376, 2.0
    %v579 = vmul.f32 %v381, 2.0
    %v580 = vmul.f32 %v386, 2.0
    %v581 = vmul.f32 %v391, 2.0
    %v582 = vmul.f32 %v396, 2.0
    %v583 = vmul.f32 %v401, 2.0
    %v584 = vmul.f32 %v406, 2.0
    %v585 = vmul.f32 %v411, 2.0
    %v586 = vsub.f32 %v554, %v570
    %v587 = vsub.f32 %v555, %v571
    %v588 = vsub.f32 %v556, %v572
    %v589 = vsub.f32 %v557, %v573
    %v590 = vsub.f32 %v558, %v574
    %v591 = vsub.f32 %v559, %v575
    %v592 = vsub.f32 %v560, %v576
    %v593 = vsub.f32 %v561, %v577
    %v594 = vsub.f32 %v562, %v578
    %v595 = vsub.f32 %v563, %v579
    %v596 = vsub.f32 %v564, %v580
    %v597 = vsub.f32 %v565, %v581
    %v598 = vsub.f32 %v566, %v582
    %v599 = vsub.f32 %v567, %v583
    %v600 = vsub.f32 %v568, %v584
    %v601 = vsub.f32 %v569, %v585
    %v602 = vmul.f32 %v586, -1.0
    %v603 = vmul.f32 %v587, -1.0
    %v604 = vmul.f32 %v588, -1.0
    %v605 = vmul.f32 %v589, -1.0
    %v606 = vmul.f32 %v590, -1.0
    %v607 = vmul.f32 %v591, -1.0
    %v608 = vmul.f32 %v592, -1.0
    %v609 = vmul.f32 %v593, -1.0
    %v610 = vmul.f32 %v594, -1.0
    %v611 = vmul.f32 %v595, -1.0
    %v612 = vmul.f32 %v596, -1.0
    %v613 = vmul.f32 %v597, -1.0
    %v614 = vmul.f32 %v598, -1.0
    %v615 = vmul.f32 %v599, -1.0
    %v616 = vmul.f32 %v600, -1.0
    %v617 = vmul.f32 %v601, -1.0
    %v618 = vmul.f32 %v602, 1.442695
    %v619 = vpow.pop %v618
    %v620 = vmul.f32 %v603, 1.442695
    %v621 = vpow.pop %v620
    %v622 = vmul.f32 %v604, 1.442695
    %v623 = vpow.pop %v622
    %v624 = vmul.f32 %v605, 1.442695
    %v625 = vpow.pop %v624
    %v626 = vmul.f32 %v606, 1.442695
    %v627 = vpow.pop %v626
    %v628 = vmul.f32 %v607, 1.442695
    %v629 = vpow.pop %v628
    %v630 = vmul.f32 %v608, 1.442695
    %v631 = vpow.pop %v630
    %v632 = vmul.f32 %v609, 1.442695
    %v633 = vpow.pop %v632
    %v634 = vmul.f32 %v610, 1.442695
    %v635 = vpow.pop %v634
    %v636 = vmul.f32 %v611, 1.442695
    %v637 = vpow.pop %v636
    %v638 = vmul.f32 %v612, 1.442695
    %v639 = vpow.pop %v638
    %v640 = vmul.f32 %v613, 1.442695
    %v641 = vpow.pop %v640
    %v642 = vmul.f32 %v614, 1.442695
    %v643 = vpow.pop %v642
    %v644 = vmul.f32 %v615, 1.442695
    %v645 = vpow.pop %v644
    %v646 = vmul.f32 %v616, 1.442695
    %v647 = vpow.pop %v646
    %v648 = vmul.f32 %v617, 1.442695
    %v649 = vpow.pop %v648
    %650 = vmatprep.subr.mxu0 0.0
    %651 = vmatpush1.xpose.msra.mxu0 %v619
    %652 = vmatprep.subr.mxu0 0.0
    %653 = vmatpush1.xpose.msra.mxu0 %v621
    %654 = vmatprep.subr.mxu0 0.0
    %655 = vmatpush1.xpose.msra.mxu0 %v623
    %656 = vmatprep.subr.mxu0 0.0
    %657 = vmatpush1.xpose.msra.mxu0 %v625
    %658 = vmatprep.subr.mxu0 0.0
    %659 = vmatpush1.xpose.msra.mxu0 %v627
    %660 = vmatprep.subr.mxu0 0.0
    %661 = vmatpush1.xpose.msra.mxu0 %v629
    %662 = vmatprep.subr.mxu0 0.0
    %663 = vmatpush1.xpose.msra.mxu0 %v631
    %664 = vmatprep.subr.mxu0 0.0
    %665 = vmatpush1.xpose.msra.mxu0 %v633
    %666 = vmatprep.subr.mxu0 0.0
    %667 = vmatpush1.xpose.msra.mxu0 %v635
    %668 = vmatprep.subr.mxu0 0.0
    %669 = vmatpush1.xpose.msra.mxu0 %v637
    %670 = vmatprep.subr.mxu0 0.0
    %671 = vmatpush1.xpose.msra.mxu0 %v639
    %672 = vmatprep.subr.mxu0 0.0
    %673 = vmatpush1.xpose.msra.mxu0 %v641
    %674 = vmatprep.subr.mxu0 0.0
    %675 = vmatpush1.xpose.msra.mxu0 %v643
    %676 = vmatprep.subr.mxu0 0.0
    %677 = vmatpush1.xpose.msra.mxu0 %v645
    %678 = vmatprep.subr.mxu0 0.0
    %679 = vmatpush1.xpose.msra.mxu0 %v647
    %680 = vmatprep.subr.mxu0 0.0
    %681 = vmatpush1.xpose.msra.mxu0 %v649
    %682 = vmatprep.subr.mxu0 0.0
    %683 = vmatpush1.xpose.msra.mxu0 0.0
    %684 = vmatprep.subr.mxu0 0.0
    %685 = vmatpush1.xpose.msra.mxu0 0.0
    %686 = vmatprep.subr.mxu0 0.0
    %687 = vmatpush1.xpose.msra.mxu0 0.0
    %688 = vmatprep.subr.mxu0 0.0
    %689 = vmatpush1.xpose.msra.mxu0 0.0
    %690 = vmatprep.subr.mxu0 0.0
    %691 = vmatpush1.xpose.msra.mxu0 0.0
    %692 = vmatprep.subr.mxu0 0.0
    %693 = vmatpush1.xpose.msra.mxu0 0.0
    %694 = vmatprep.subr.mxu0 0.0
    %695 = vmatpush1.xpose.msra.mxu0 0.0
    %696 = vmatprep.subr.mxu0 0.0
    %697 = vmatpush1.xpose.msra.mxu0 0.0
    %698 = vmatprep.subr.mxu0 0.0
    %699 = vmatpush1.xpose.msra.mxu0 0.0
    %700 = vmatprep.subr.mxu0 0.0
    %701 = vmatpush1.xpose.msra.mxu0 0.0
    %702 = vmatprep.subr.mxu0 0.0
    %703 = vmatpush1.xpose.msra.mxu0 0.0
    %704 = vmatprep.subr.mxu0 0.0
    %705 = vmatpush1.xpose.msra.mxu0 0.0
    %706 = vmatprep.subr.mxu0 0.0
    %707 = vmatpush1.xpose.msra.mxu0 0.0
    %708 = vmatprep.subr.mxu0 0.0
    %709 = vmatpush1.xpose.msra.mxu0 0.0
    %710 = vmatprep.subr.mxu0 0.0
    %711 = vmatpush1.xpose.msra.mxu0 0.0
    %712 = vmatprep.subr.mxu0 0.0
    %713 = vmatpush1.xpose.msra.mxu0 0.0
    %714 = vmatprep.mubr.f32.mxu0 0.0
    %715 = vmatmul.mubr.f32.gmra.mrb[0].mxu0 1.0
    %v716 = vpop.f32.mrb[0].mxu0
    %v717 = vadd.f32 0.0, %v716
    %v718 = vpop.f32.mrb[0].mxu0
    %719 = vdwg.mxu0
    %v720 = vrcp.pop %v717
    %v721 = vmul.f32 %v720, 0.0078125
    %722 = vmatprep.subr.mxu0 0.0
    %723 = vmatpush1.msra.mxu0 %v619
    %724 = vmatprep.subr.mxu0 0.0
    %725 = vmatpush1.msra.mxu0 %v621
    %726 = vmatprep.subr.mxu0 0.0
    %727 = vmatpush1.msra.mxu0 %v623
    %728 = vmatprep.subr.mxu0 0.0
    %729 = vmatpush1.msra.mxu0 %v625
    %730 = vmatprep.subr.mxu0 0.0
    %731 = vmatpush1.msra.mxu0 %v627
    %732 = vmatprep.subr.mxu0 0.0
    %733 = vmatpush1.msra.mxu0 %v629
    %734 = vmatprep.subr.mxu0 0.0
    %735 = vmatpush1.msra.mxu0 %v631
    %736 = vmatprep.subr.mxu0 0.0
    %737 = vmatpush1.msra.mxu0 %v633
    %738 = vmatprep.subr.mxu0 0.0
    %739 = vmatpush1.msra.mxu0 %v635
    %740 = vmatprep.subr.mxu0 0.0
    %741 = vmatpush1.msra.mxu0 %v637
    %742 = vmatprep.subr.mxu0 0.0
    %743 = vmatpush1.msra.mxu0 %v639
    %744 = vmatprep.subr.mxu0 0.0
    %745 = vmatpush1.msra.mxu0 %v641
    %746 = vmatprep.subr.mxu0 0.0
    %747 = vmatpush1.msra.mxu0 %v643
    %748 = vmatprep.subr.mxu0 0.0
    %749 = vmatpush1.msra.mxu0 %v645
    %750 = vmatprep.subr.mxu0 0.0
    %751 = vmatpush1.msra.mxu0 %v647
    %752 = vmatprep.subr.mxu0 0.0
    %753 = vmatpush1.msra.mxu0 %v649
    %754 = vmatprep.subr.mxu0 0.0
    %755 = vmatpush1.msra.mxu0 0.0
    %756 = vmatprep.subr.mxu0 0.0
    %757 = vmatpush1.msra.mxu0 0.0
    %758 = vmatprep.subr.mxu0 0.0
    %759 = vmatpush1.msra.mxu0 0.0
    %760 = vmatprep.subr.mxu0 0.0
    %761 = vmatpush1.msra.mxu0 0.0
    %762 = vmatprep.subr.mxu0 0.0
    %763 = vmatpush1.msra.mxu0 0.0
    %764 = vmatprep.subr.mxu0 0.0
    %765 = vmatpush1.msra.mxu0 0.0
    %766 = vmatprep.subr.mxu0 0.0
    %767 = vmatpush1.msra.mxu0 0.0
    %768 = vmatprep.subr.mxu0 0.0
    %769 = vmatpush1.msra.mxu0 0.0
    %770 = vmatprep.subr.mxu0 0.0
    %771 = vmatpush1.msra.mxu0 0.0
    %772 = vmatprep.subr.mxu0 0.0
    %773 = vmatpush1.msra.mxu0 0.0
    %774 = vmatprep.subr.mxu0 0.0
    %775 = vmatpush1.msra.mxu0 0.0
    %776 = vmatprep.subr.mxu0 0.0
    %777 = vmatpush1.msra.mxu0 0.0
    %778 = vmatprep.subr.mxu0 0.0
    %779 = vmatpush1.msra.mxu0 0.0
    %780 = vmatprep.subr.mxu0 0.0
    %781 = vmatpush1.msra.mxu0 0.0
    %782 = vmatprep.subr.mxu0 0.0
    %783 = vmatpush1.msra.mxu0 0.0
    %784 = vmatprep.subr.mxu0 0.0
    %785 = vmatpush1.msra.mxu0 0.0
    %786 = vmatprep.mubr.f32.mxu0 0.0
    %787 = vmatmul.mubr.f32.gmra.mrb[0].mxu0 %v721
    %v788 = vpop.f32.mrb[0].mxu0
    %v789 = vadd.f32 0.0, %v788
    %v790 = vpop.f32.mrb[0].mxu0
    %791 = vdwg.mxu0
    %v792 = vrcp.pop %v789
    %v793 = vmul.f32 %v792, 0.0078125
    %794 = vmatprep.subr.mxu0 0.0
    %795 = vmatpush1.xpose.msra.mxu0 %v619
    %796 = vmatprep.subr.mxu0 0.0
    %797 = vmatpush1.xpose.msra.mxu0 %v621
    %798 = vmatprep.subr.mxu0 0.0
    %799 = vmatpush1.xpose.msra.mxu0 %v623
    %800 = vmatprep.subr.mxu0 0.0
    %801 = vmatpush1.xpose.msra.mxu0 %v625
    %802 = vmatprep.subr.mxu0 0.0
    %803 = vmatpush1.xpose.msra.mxu0 %v627
    %804 = vmatprep.subr.mxu0 0.0
    %805 = vmatpush1.xpose.msra.mxu0 %v629
    %806 = vmatprep.subr.mxu0 0.0
    %807 = vmatpush1.xpose.msra.mxu0 %v631
    %808 = vmatprep.subr.mxu0 0.0
    %809 = vmatpush1.xpose.msra.mxu0 %v633
    %810 = vmatprep.subr.mxu0 0.0
    %811 = vmatpush1.xpose.msra.mxu0 %v635
    %812 = vmatprep.subr.mxu0 0.0
    %813 = vmatpush1.xpose.msra.mxu0 %v637
    %814 = vmatprep.subr.mxu0 0.0
    %815 = vmatpush1.xpose.msra.mxu0 %v639
    %816 = vmatprep.subr.mxu0 0.0
    %817 = vmatpush1.xpose.msra.mxu0 %v641
    %818 = vmatprep.subr.mxu0 0.0
    %819 = vmatpush1.xpose.msra.mxu0 %v643
    %820 = vmatprep.subr.mxu0 0.0
    %821 = vmatpush1.xpose.msra.mxu0 %v645
    %822 = vmatprep.subr.mxu0 0.0
    %823 = vmatpush1.xpose.msra.mxu0 %v647
    %824 = vmatprep.subr.mxu0 0.0
    %825 = vmatpush1.xpose.msra.mxu0 %v649
    %826 = vmatprep.subr.mxu0 0.0
    %827 = vmatpush1.xpose.msra.mxu0 0.0
    %828 = vmatprep.subr.mxu0 0.0
    %829 = vmatpush1.xpose.msra.mxu0 0.0
    %830 = vmatprep.subr.mxu0 0.0
    %831 = vmatpush1.xpose.msra.mxu0 0.0
    %832 = vmatprep.subr.mxu0 0.0
    %833 = vmatpush1.xpose.msra.mxu0 0.0
    %834 = vmatprep.subr.mxu0 0.0
    %835 = vmatpush1.xpose.msra.mxu0 0.0
    %836 = vmatprep.subr.mxu0 0.0
    %837 = vmatpush1.xpose.msra.mxu0 0.0
    %838 = vmatprep.subr.mxu0 0.0
    %839 = vmatpush1.xpose.msra.mxu0 0.0
    %840 = vmatprep.subr.mxu0 0.0
    %841 = vmatpush1.xpose.msra.mxu0 0.0
    %842 = vmatprep.subr.mxu0 0.0
    %843 = vmatpush1.xpose.msra.mxu0 0.0
    %844 = vmatprep.subr.mxu0 0.0
    %845 = vmatpush1.xpose.msra.mxu0 0.0
    %846 = vmatprep.subr.mxu0 0.0
    %847 = vmatpush1.xpose.msra.mxu0 0.0
    %848 = vmatprep.subr.mxu0 0.0
    %849 = vmatpush1.xpose.msra.mxu0 0.0
    %850 = vmatprep.subr.mxu0 0.0
    %851 = vmatpush1.xpose.msra.mxu0 0.0
    %852 = vmatprep.subr.mxu0 0.0
    %853 = vmatpush1.xpose.msra.mxu0 0.0
    %854 = vmatprep.subr.mxu0 0.0
    %855 = vmatpush1.xpose.msra.mxu0 0.0
    %856 = vmatprep.subr.mxu0 0.0
    %857 = vmatpush1.xpose.msra.mxu0 0.0
    %858 = vmatprep.mubr.f32.mxu0 0.0
    %859 = vmatmul.mubr.f32.gmra.mrb[0].mxu0 %v793
    %v860 = vpop.f32.mrb[0].mxu0
    %v861 = vadd.f32 0.0, %v860
    %v862 = vpop.f32.mrb[0].mxu0
    %863 = vdwg.mxu0
    %v864 = vrcp.pop %v861
    %v865 = vmul.f32 %v864, 0.0078125
    %866 = vmatprep.subr.mxu0 0.0
    %867 = vmatpush1.msra.mxu0 %v619
    %868 = vmatprep.subr.mxu0 0.0
    %869 = vmatpush1.msra.mxu0 %v621
    %870 = vmatprep.subr.mxu0 0.0
    %871 = vmatpush1.msra.mxu0 %v623
    %872 = vmatprep.subr.mxu0 0.0
    %873 = vmatpush1.msra.mxu0 %v625
    %874 = vmatprep.subr.mxu0 0.0
    %875 = vmatpush1.msra.mxu0 %v627
    %876 = vmatprep.subr.mxu0 0.0
    %877 = vmatpush1.msra.mxu0 %v629
    %878 = vmatprep.subr.mxu0 0.0
    %879 = vmatpush1.msra.mxu0 %v631
    %880 = vmatprep.subr.mxu0 0.0
    %881 = vmatpush1.msra.mxu0 %v633
    %882 = vmatprep.subr.mxu0 0.0
    %883 = vmatpush1.msra.mxu0 %v635
    %884 = vmatprep.subr.mxu0 0.0
    %885 = vmatpush1.msra.mxu0 %v637
    %886 = vmatprep.subr.mxu0 0.0
    %887 = vmatpush1.msra.mxu0 %v639
    %888 = vmatprep.subr.mxu0 0.0
    %889 = vmatpush1.msra.mxu0 %v641
    %890 = vmatprep.subr.mxu0 0.0
    %891 = vmatpush1.msra.mxu0 %v643
    %892 = vmatprep.subr.mxu0 0.0
    %893 = vmatpush1.msra.mxu0 %v645
    %894 = vmatprep.subr.mxu0 0.0
    %895 = vmatpush1.msra.mxu0 %v647
    %896 = vmatprep.subr.mxu0 0.0
    %897 = vmatpush1.msra.mxu0 %v649
    %898 = vmatprep.subr.mxu0 0.0
    %899 = vmatpush1.msra.mxu0 0.0
    %900 = vmatprep.subr.mxu0 0.0
    %901 = vmatpush1.msra.mxu0 0.0
    %902 = vmatprep.subr.mxu0 0.0
    %903 = vmatpush1.msra.mxu0 0.0
    %904 = vmatprep.subr.mxu0 0.0
    %905 = vmatpush1.msra.mxu0 0.0
    %906 = vmatprep.subr.mxu0 0.0
    %907 = vmatpush1.msra.mxu0 0.0
    %908 = vmatprep.subr.mxu0 0.0
    %909 = vmatpush1.msra.mxu0 0.0
    %910 = vmatprep.subr.mxu0 0.0
    %911 = vmatpush1.msra.mxu0 0.0
    %912 = vmatprep.subr.mxu0 0.0
    %913 = vmatpush1.msra.mxu0 0.0
    %914 = vmatprep.subr.mxu0 0.0
    %915 = vmatpush1.msra.mxu0 0.0
    %916 = vmatprep.subr.mxu0 0.0
    %917 = vmatpush1.msra.mxu0 0.0
    %918 = vmatprep.subr.mxu0 0.0
    %919 = vmatpush1.msra.mxu0 0.0
    %920 = vmatprep.subr.mxu0 0.0
    %921 = vmatpush1.msra.mxu0 0.0
    %922 = vmatprep.subr.mxu0 0.0
    %923 = vmatpush1.msra.mxu0 0.0
    %924 = vmatprep.subr.mxu0 0.0
    %925 = vmatpush1.msra.mxu0 0.0
    %926 = vmatprep.subr.mxu0 0.0
    %927 = vmatpush1.msra.mxu0 0.0
    %928 = vmatprep.subr.mxu0 0.0
    %929 = vmatpush1.msra.mxu0 0.0
    %930 = vmatprep.mubr.f32.mxu0 0.0
    %931 = vmatmul.mubr.f32.gmra.mrb[0].mxu0 %v865
    %v932 = vpop.f32.mrb[0].mxu0
    %v933 = vadd.f32 0.0, %v932
    %v934 = vpop.f32.mrb[0].mxu0
    %935 = vdwg.mxu0
    %v936 = vrcp.pop %v933
    %v937 = vmul.f32 %v936, 0.0078125
    %938 = vmatprep.subr.mxu0 0.0
    %939 = vmatpush1.xpose.msra.mxu0 %v619
    %940 = vmatprep.subr.mxu0 0.0
    %941 = vmatpush1.xpose.msra.mxu0 %v621
    %942 = vmatprep.subr.mxu0 0.0
    %943 = vmatpush1.xpose.msra.mxu0 %v623
    %944 = vmatprep.subr.mxu0 0.0
    %945 = vmatpush1.xpose.msra.mxu0 %v625
    %946 = vmatprep.subr.mxu0 0.0
    %947 = vmatpush1.xpose.msra.mxu0 %v627
    %948 = vmatprep.subr.mxu0 0.0
    %949 = vmatpush1.xpose.msra.mxu0 %v629
    %950 = vmatprep.subr.mxu0 0.0
    %951 = vmatpush1.xpose.msra.mxu0 %v631
    %952 = vmatprep.subr.mxu0 0.0
    %953 = vmatpush1.xpose.msra.mxu0 %v633
    %954 = vmatprep.subr.mxu0 0.0
    %955 = vmatpush1.xpose.msra.mxu0 %v635
    %956 = vmatprep.subr.mxu0 0.0
    %957 = vmatpush1.xpose.msra.mxu0 %v637
    %958 = vmatprep.subr.mxu0 0.0
    %959 = vmatpush1.xpose.msra.mxu0 %v639
    %960 = vmatprep.subr.mxu0 0.0
    %961 = vmatpush1.xpose.msra.mxu0 %v641
    %962 = vmatprep.subr.mxu0 0.0
    %963 = vmatpush1.xpose.msra.mxu0 %v643
    %964 = vmatprep.subr.mxu0 0.0
    %965 = vmatpush1.xpose.msra.mxu0 %v645
    %966 = vmatprep.subr.mxu0 0.0
    %967 = vmatpush1.xpose.msra.mxu0 %v647
    %968 = vmatprep.subr.mxu0 0.0
    %969 = vmatpush1.xpose.msra.mxu0 %v649
    %970 = vmatprep.subr.mxu0 0.0
    %971 = vmatpush1.xpose.msra.mxu0 0.0
    %972 = vmatprep.subr.mxu0 0.0
    %973 = vmatpush1.xpose.msra.mxu0 0.0
    %974 = vmatprep.subr.mxu0 0.0
    %975 = vmatpush1.xpose.msra.mxu0 0.0
    %976 = vmatprep.subr.mxu0 0.0
    %977 = vmatpush1.xpose.msra.mxu0 0.0
    %978 = vmatprep.subr.mxu0 0.0
    %979 = vmatpush1.xpose.msra.mxu0 0.0
    %980 = vmatprep.subr.mxu0 0.0
    %981 = vmatpush1.xpose.msra.mxu0 0.0
    %982 = vmatprep.subr.mxu0 0.0
    %983 = vmatpush1.xpose.msra.mxu0 0.0
    %984 = vmatprep.subr.mxu0 0.0
    %985 = vmatpush1.xpose.msra.mxu0 0.0
    %986 = vmatprep.subr.mxu0 0.0
    %987 = vmatpush1.xpose.msra.mxu0 0.0
    %988 = vmatprep.subr.mxu0 0.0
    %989 = vmatpush1.xpose.msra.mxu0 0.0
    %990 = vmatprep.subr.mxu0 0.0
    %991 = vmatpush1.xpose.msra.mxu0 0.0
    %992 = vmatprep.subr.mxu0 0.0
    %993 = vmatpush1.xpose.msra.mxu0 0.0
    %994 = vmatprep.subr.mxu0 0.0
    %995 = vmatpush1.xpose.msra.mxu0 0.0
    %996 = vmatprep.subr.mxu0 0.0
    %997 = vmatpush1.xpose.msra.mxu0 0.0
    %998 = vmatprep.subr.mxu0 0.0
    %999 = vmatpush1.xpose.msra.mxu0 0.0
    %1000 = vmatprep.subr.mxu0 0.0
    %1001 = vmatpush1.xpose.msra.mxu0 0.0
    %1002 = vmatprep.mubr.f32.mxu0 0.0
    %1003 = vmatmul.mubr.f32.gmra.mrb[0].mxu0 %v937
    %v1004 = vpop.f32.mrb[0].mxu0
    %v1005 = vadd.f32 0.0, %v1004
    %v1006 = vpop.f32.mrb[0].mxu0
    %1007 = vdwg.mxu0
    %v1008 = vrcp.pop %v1005
    %v1009 = vmul.f32 %v1008, 0.0078125
    %1010 = vmatprep.subr.mxu0 0.0
    %1011 = vmatpush1.msra.mxu0 %v619
    %1012 = vmatprep.subr.mxu0 0.0
    %1013 = vmatpush1.msra.mxu0 %v621
    %1014 = vmatprep.subr.mxu0 0.0
    %1015 = vmatpush1.msra.mxu0 %v623
    %1016 = vmatprep.subr.mxu0 0.0
    %1017 = vmatpush1.msra.mxu0 %v625
    %1018 = vmatprep.subr.mxu0 0.0
    %1019 = vmatpush1.msra.mxu0 %v627
    %1020 = vmatprep.subr.mxu0 0.0
    %1021 = vmatpush1.msra.mxu0 %v629
    %1022 = vmatprep.subr.mxu0 0.0
    %1023 = vmatpush1.msra.mxu0 %v631
    %1024 = vmatprep.subr.mxu0 0.0
    %1025 = vmatpush1.msra.mxu0 %v633
    %1026 = vmatprep.subr.mxu0 0.0
    %1027 = vmatpush1.msra.mxu0 %v635
    %1028 = vmatprep.subr.mxu0 0.0
    %1029 = vmatpush1.msra.mxu0 %v637
    %1030 = vmatprep.subr.mxu0 0.0
    %1031 = vmatpush1.msra.mxu0 %v639
    %1032 = vmatprep.subr.mxu0 0.0
    %1033 = vmatpush1.msra.mxu0 %v641
    %1034 = vmatprep.subr.mxu0 0.0
    %1035 = vmatpush1.msra.mxu0 %v643
    %1036 = vmatprep.subr.mxu0 0.0
    %1037 = vmatpush1.msra.mxu0 %v645
    %1038 = vmatprep.subr.mxu0 0.0
    %1039 = vmatpush1.msra.mxu0 %v647
    %1040 = vmatprep.subr.mxu0 0.0
    %1041 = vmatpush1.msra.mxu0 %v649
    %1042 = vmatprep.subr.mxu0 0.0
    %1043 = vmatpush1.msra.mxu0 0.0
    %1044 = vmatprep.subr.mxu0 0.0
    %1045 = vmatpush1.msra.mxu0 0.0
    %1046 = vmatprep.subr.mxu0 0.0
    %1047 = vmatpush1.msra.mxu0 0.0
    %1048 = vmatprep.subr.mxu0 0.0
    %1049 = vmatpush1.msra.mxu0 0.0
    %1050 = vmatprep.subr.mxu0 0.0
    %1051 = vmatpush1.msra.mxu0 0.0
    %1052 = vmatprep.subr.mxu0 0.0
    %1053 = vmatpush1.msra.mxu0 0.0
    %1054 = vmatprep.subr.mxu0 0.0
    %1055 = vmatpush1.msra.mxu0 0.0
    %1056 = vmatprep.subr.mxu0 0.0
    %1057 = vmatpush1.msra.mxu0 0.0
    %1058 = vmatprep.subr.mxu0 0.0
    %1059 = vmatpush1.msra.mxu0 0.0
    %1060 = vmatprep.subr.mxu0 0.0
    %1061 = vmatpush1.msra.mxu0 0.0
    %1062 = vmatprep.subr.mxu0 0.0
    %1063 = vmatpush1.msra.mxu0 0.0
    %1064 = vmatprep.subr.mxu0 0.0
    %1065 = vmatpush1.msra.mxu0 0.0
    %1066 = vmatprep.subr.mxu0 0.0
    %1067 = vmatpush1.msra.mxu0 0.0
    %1068 = vmatprep.subr.mxu0 0.0
    %1069 = vmatpush1.msra.mxu0 0.0
    %1070 = vmatprep.subr.mxu0 0.0
    %1071 = vmatpush1.msra.mxu0 0.0
    %1072 = vmatprep.subr.mxu0 0.0
    %1073 = vmatpush1.msra.mxu0 0.0
    %1074 = vmatprep.mubr.f32.mxu0 0.0
    %1075 = vmatmul.mubr.f32.gmra.mrb[0].mxu0 %v1009
    %v1076 = vpop.f32.mrb[0].mxu0
    %v1077 = vadd.f32 0.0, %v1076
    %v1078 = vpop.f32.mrb[0].mxu0
    %1079 = vdwg.mxu0
    %v1080 = vrcp.pop %v1077
    %v1081 = vmul.f32 %v1080, 0.0078125
    %1082 = vmatprep.subr.mxu0 0.0
    %1083 = vmatpush1.xpose.msra.mxu0 %v619
    %1084 = vmatprep.subr.mxu0 0.0
    %1085 = vmatpush1.xpose.msra.mxu0 %v621
    %1086 = vmatprep.subr.mxu0 0.0
    %1087 = vmatpush1.xpose.msra.mxu0 %v623
    %1088 = vmatprep.subr.mxu0 0.0
    %1089 = vmatpush1.xpose.msra.mxu0 %v625
    %1090 = vmatprep.subr.mxu0 0.0
    %1091 = vmatpush1.xpose.msra.mxu0 %v627
    %1092 = vmatprep.subr.mxu0 0.0
    %1093 = vmatpush1.xpose.msra.mxu0 %v629
    %1094 = vmatprep.subr.mxu0 0.0
    %1095 = vmatpush1.xpose.msra.mxu0 %v631
    %1096 = vmatprep.subr.mxu0 0.0
    %1097 = vmatpush1.xpose.msra.mxu0 %v633
    %1098 = vmatprep.subr.mxu0 0.0
    %1099 = vmatpush1.xpose.msra.mxu0 %v635
    %1100 = vmatprep.subr.mxu0 0.0
    %1101 = vmatpush1.xpose.msra.mxu0 %v637
    %1102 = vmatprep.subr.mxu0 0.0
    %1103 = vmatpush1.xpose.msra.mxu0 %v639
    %1104 = vmatprep.subr.mxu0 0.0
    %1105 = vmatpush1.xpose.msra.mxu0 %v641
    %1106 = vmatprep.subr.mxu0 0.0
    %1107 = vmatpush1.xpose.msra.mxu0 %v643
    %1108 = vmatprep.subr.mxu0 0.0
    %1109 = vmatpush1.xpose.msra.mxu0 %v645
    %1110 = vmatprep.subr.mxu0 0.0
    %1111 = vmatpush1.xpose.msra.mxu0 %v647
    %1112 = vmatprep.subr.mxu0 0.0
    %1113 = vmatpush1.xpose.msra.mxu0 %v649
    %1114 = vmatprep.subr.mxu0 0.0
    %1115 = vmatpush1.xpose.msra.mxu0 0.0
    %1116 = vmatprep.subr.mxu0 0.0
    %1117 = vmatpush1.xpose.msra.mxu0 0.0
    %1118 = vmatprep.subr.mxu0 0.0
    %1119 = vmatpush1.xpose.msra.mxu0 0.0
    %1120 = vmatprep.subr.mxu0 0.0
    %1121 = vmatpush1.xpose.msra.mxu0 0.0
    %1122 = vmatprep.subr.mxu0 0.0
    %1123 = vmatpush1.xpose.msra.mxu0 0.0
    %1124 = vmatprep.subr.mxu0 0.0
    %1125 = vmatpush1.xpose.msra.mxu0 0.0
    %1126 = vmatprep.subr.mxu0 0.0
    %1127 = vmatpush1.xpose.msra.mxu0 0.0
    %1128 = vmatprep.subr.mxu0 0.0
    %1129 = vmatpush1.xpose.msra.mxu0 0.0
    %1130 = vmatprep.subr.mxu0 0.0
    %1131 = vmatpush1.xpose.msra.mxu0 0.0
    %1132 = vmatprep.subr.mxu0 0.0
    %1133 = vmatpush1.xpose.msra.mxu0 0.0
    %1134 = vmatprep.subr.mxu0 0.0
    %1135 = vmatpush1.xpose.msra.mxu0 0.0
    %1136 = vmatprep.subr.mxu0 0.0
    %1137 = vmatpush1.xpose.msra.mxu0 0.0
    %1138 = vmatprep.subr.mxu0 0.0
    %1139 = vmatpush1.xpose.msra.mxu0 0.0
    %1140 = vmatprep.subr.mxu0 0.0
    %1141 = vmatpush1.xpose.msra.mxu0 0.0
    %1142 = vmatprep.subr.mxu0 0.0
    %1143 = vmatpush1.xpose.msra.mxu0 0.0
    %1144 = vmatprep.subr.mxu0 0.0
    %1145 = vmatpush1.xpose.msra.mxu0 0.0
    %1146 = vmatprep.mubr.f32.mxu0 0.0
    %1147 = vmatmul.mubr.f32.gmra.mrb[0].mxu0 %v1081
    %v1148 = vpop.f32.mrb[0].mxu0
    %v1149 = vadd.f32 0.0, %v1148
    %v1150 = vpop.f32.mrb[0].mxu0
    %1151 = vdwg.mxu0
    %v1152 = vrcp.pop %v1149
    %v1153 = vmul.f32 %v1152, 0.0078125
    %1154 = vmatprep.subr.mxu0 0.0
    %1155 = vmatpush1.msra.mxu0 %v619
    %1156 = vmatprep.subr.mxu0 0.0
    %1157 = vmatpush1.msra.mxu0 %v621
    %1158 = vmatprep.subr.mxu0 0.0
    %1159 = vmatpush1.msra.mxu0 %v623
    %1160 = vmatprep.subr.mxu0 0.0
    %1161 = vmatpush1.msra.mxu0 %v625
    %1162 = vmatprep.subr.mxu0 0.0
    %1163 = vmatpush1.msra.mxu0 %v627
    %1164 = vmatprep.subr.mxu0 0.0
    %1165 = vmatpush1.msra.mxu0 %v629
    %1166 = vmatprep.subr.mxu0 0.0
    %1167 = vmatpush1.msra.mxu0 %v631
    %1168 = vmatprep.subr.mxu0 0.0
    %1169 = vmatpush1.msra.mxu0 %v633
    %1170 = vmatprep.subr.mxu0 0.0
    %1171 = vmatpush1.msra.mxu0 %v635
    %1172 = vmatprep.subr.mxu0 0.0
    %1173 = vmatpush1.msra.mxu0 %v637
    %1174 = vmatprep.subr.mxu0 0.0
    %1175 = vmatpush1.msra.mxu0 %v639
    %1176 = vmatprep.subr.mxu0 0.0
    %1177 = vmatpush1.msra.mxu0 %v641
    %1178 = vmatprep.subr.mxu0 0.0
    %1179 = vmatpush1.msra.mxu0 %v643
    %1180 = vmatprep.subr.mxu0 0.0
    %1181 = vmatpush1.msra.mxu0 %v645
    %1182 = vmatprep.subr.mxu0 0.0
    %1183 = vmatpush1.msra.mxu0 %v647
    %1184 = vmatprep.subr.mxu0 0.0
    %1185 = vmatpush1.msra.mxu0 %v649
    %1186 = vmatprep.subr.mxu0 0.0
    %1187 = vmatpush1.msra.mxu0 0.0
    %1188 = vmatprep.subr.mxu0 0.0
    %1189 = vmatpush1.msra.mxu0 0.0
    %1190 = vmatprep.subr.mxu0 0.0
    %1191 = vmatpush1.msra.mxu0 0.0
    %1192 = vmatprep.subr.mxu0 0.0
    %1193 = vmatpush1.msra.mxu0 0.0
    %1194 = vmatprep.subr.mxu0 0.0
    %1195 = vmatpush1.msra.mxu0 0.0
    %1196 = vmatprep.subr.mxu0 0.0
    %1197 = vmatpush1.msra.mxu0 0.0
    %1198 = vmatprep.subr.mxu0 0.0
    %1199 = vmatpush1.msra.mxu0 0.0
    %1200 = vmatprep.subr.mxu0 0.0
    %1201 = vmatpush1.msra.mxu0 0.0
    %1202 = vmatprep.subr.mxu0 0.0
    %1203 = vmatpush1.msra.mxu0 0.0
    %1204 = vmatprep.subr.mxu0 0.0
    %1205 = vmatpush1.msra.mxu0 0.0
    %1206 = vmatprep.subr.mxu0 0.0
    %1207 = vmatpush1.msra.mxu0 0.0
    %1208 = vmatprep.subr.mxu0 0.0
    %1209 = vmatpush1.msra.mxu0 0.0
    %1210 = vmatprep.subr.mxu0 0.0
    %1211 = vmatpush1.msra.mxu0 0.0
    %1212 = vmatprep.subr.mxu0 0.0
    %1213 = vmatpush1.msra.mxu0 0.0
    %1214 = vmatprep.subr.mxu0 0.0
    %1215 = vmatpush1.msra.mxu0 0.0
    %1216 = vmatprep.subr.mxu0 0.0
    %1217 = vmatpush1.msra.mxu0 0.0
    %1218 = vmatprep.mubr.f32.mxu0 0.0
    %1219 = vmatmul.mubr.f32.gmra.mrb[0].mxu0 %v1153
    %v1220 = vpop.f32.mrb[0].mxu0
    %v1221 = vadd.f32 0.0, %v1220
    %v1222 = vpop.f32.mrb[0].mxu0
    %1223 = vdwg.mxu0
    %v1224 = vrcp.pop %v1221
    %v1225 = vmul.f32 %v1224, 0.0078125
    %1226 = vmatprep.subr.mxu0 0.0
    %1227 = vmatpush1.xpose.msra.mxu0 %v619
    %1228 = vmatprep.subr.mxu0 0.0
    %1229 = vmatpush1.xpose.msra.mxu0 %v621
    %1230 = vmatprep.subr.mxu0 0.0
    %1231 = vmatpush1.xpose.msra.mxu0 %v623
    %1232 = vmatprep.subr.mxu0 0.0
    %1233 = vmatpush1.xpose.msra.mxu0 %v625
    %1234 = vmatprep.subr.mxu0 0.0
    %1235 = vmatpush1.xpose.msra.mxu0 %v627
    %1236 = vmatprep.subr.mxu0 0.0
    %1237 = vmatpush1.xpose.msra.mxu0 %v629
    %1238 = vmatprep.subr.mxu0 0.0
    %1239 = vmatpush1.xpose.msra.mxu0 %v631
    %1240 = vmatprep.subr.mxu0 0.0
    %1241 = vmatpush1.xpose.msra.mxu0 %v633
    %1242 = vmatprep.subr.mxu0 0.0
    %1243 = vmatpush1.xpose.msra.mxu0 %v635
    %1244 = vmatprep.subr.mxu0 0.0
    %1245 = vmatpush1.xpose.msra.mxu0 %v637
    %1246 = vmatprep.subr.mxu0 0.0
    %1247 = vmatpush1.xpose.msra.mxu0 %v639
    %1248 = vmatprep.subr.mxu0 0.0
    %1249 = vmatpush1.xpose.msra.mxu0 %v641
    %1250 = vmatprep.subr.mxu0 0.0
    %1251 = vmatpush1.xpose.msra.mxu0 %v643
    %1252 = vmatprep.subr.mxu0 0.0
    %1253 = vmatpush1.xpose.msra.mxu0 %v645
    %1254 = vmatprep.subr.mxu0 0.0
    %1255 = vmatpush1.xpose.msra.mxu0 %v647
    %1256 = vmatprep.subr.mxu0 0.0
    %1257 = vmatpush1.xpose.msra.mxu0 %v649
    %1258 = vmatprep.subr.mxu0 0.0
    %1259 = vmatpush1.xpose.msra.mxu0 0.0
    %1260 = vmatprep.subr.mxu0 0.0
    %1261 = vmatpush1.xpose.msra.mxu0 0.0
    %1262 = vmatprep.subr.mxu0 0.0
    %1263 = vmatpush1.xpose.msra.mxu0 0.0
    %1264 = vmatprep.subr.mxu0 0.0
    %1265 = vmatpush1.xpose.msra.mxu0 0.0
    %1266 = vmatprep.subr.mxu0 0.0
    %1267 = vmatpush1.xpose.msra.mxu0 0.0
    %1268 = vmatprep.subr.mxu0 0.0
    %1269 = vmatpush1.xpose.msra.mxu0 0.0
    %1270 = vmatprep.subr.mxu0 0.0
    %1271 = vmatpush1.xpose.msra.mxu0 0.0
    %1272 = vmatprep.subr.mxu0 0.0
    %1273 = vmatpush1.xpose.msra.mxu0 0.0
    %1274 = vmatprep.subr.mxu0 0.0
    %1275 = vmatpush1.xpose.msra.mxu0 0.0
    %1276 = vmatprep.subr.mxu0 0.0
    %1277 = vmatpush1.xpose.msra.mxu0 0.0
    %1278 = vmatprep.subr.mxu0 0.0
    %1279 = vmatpush1.xpose.msra.mxu0 0.0
    %1280 = vmatprep.subr.mxu0 0.0
    %1281 = vmatpush1.xpose.msra.mxu0 0.0
    %1282 = vmatprep.subr.mxu0 0.0
    %1283 = vmatpush1.xpose.msra.mxu0 0.0
    %1284 = vmatprep.subr.mxu0 0.0
    %1285 = vmatpush1.xpose.msra.mxu0 0.0
    %1286 = vmatprep.subr.mxu0 0.0
    %1287 = vmatpush1.xpose.msra.mxu0 0.0
    %1288 = vmatprep.subr.mxu0 0.0
    %1289 = vmatpush1.xpose.msra.mxu0 0.0
    %1290 = vmatprep.mubr.f32.mxu0 0.0
    %1291 = vmatmul.mubr.f32.gmra.mrb[0].mxu0 %v1225
    %v1292 = vpop.f32.mrb[0].mxu0
    %v1293 = vadd.f32 0.0, %v1292
    %v1294 = vpop.f32.mrb[0].mxu0
    %1295 = vdwg.mxu0
    %v1296 = vrcp.pop %v1293
    %v1297 = vmul.f32 %v1296, 0.0078125
    %1298 = vmatprep.subr.mxu0 0.0
    %1299 = vmatpush1.msra.mxu0 %v619
    %1300 = vmatprep.subr.mxu0 0.0
    %1301 = vmatpush1.msra.mxu0 %v621
    %1302 = vmatprep.subr.mxu0 0.0
    %1303 = vmatpush1.msra.mxu0 %v623
    %1304 = vmatprep.subr.mxu0 0.0
    %1305 = vmatpush1.msra.mxu0 %v625
    %1306 = vmatprep.subr.mxu0 0.0
    %1307 = vmatpush1.msra.mxu0 %v627
    %1308 = vmatprep.subr.mxu0 0.0
    %1309 = vmatpush1.msra.mxu0 %v629
    %1310 = vmatprep.subr.mxu0 0.0
    %1311 = vmatpush1.msra.mxu0 %v631
    %1312 = vmatprep.subr.mxu0 0.0
    %1313 = vmatpush1.msra.mxu0 %v633
    %1314 = vmatprep.subr.mxu0 0.0
    %1315 = vmatpush1.msra.mxu0 %v635
    %1316 = vmatprep.subr.mxu0 0.0
    %1317 = vmatpush1.msra.mxu0 %v637
    %1318 = vmatprep.subr.mxu0 0.0
    %1319 = vmatpush1.msra.mxu0 %v639
    %1320 = vmatprep.subr.mxu0 0.0
    %1321 = vmatpush1.msra.mxu0 %v641
    %1322 = vmatprep.subr.mxu0 0.0
    %1323 = vmatpush1.msra.mxu0 %v643
    %1324 = vmatprep.subr.mxu0 0.0
    %1325 = vmatpush1.msra.mxu0 %v645
    %1326 = vmatprep.subr.mxu0 0.0
    %1327 = vmatpush1.msra.mxu0 %v647
    %1328 = vmatprep.subr.mxu0 0.0
    %1329 = vmatpush1.msra.mxu0 %v649
    %1330 = vmatprep.subr.mxu0 0.0
    %1331 = vmatpush1.msra.mxu0 0.0
    %1332 = vmatprep.subr.mxu0 0.0
    %1333 = vmatpush1.msra.mxu0 0.0
    %1334 = vmatprep.subr.mxu0 0.0
    %1335 = vmatpush1.msra.mxu0 0.0
    %1336 = vmatprep.subr.mxu0 0.0
    %1337 = vmatpush1.msra.mxu0 0.0
    %1338 = vmatprep.subr.mxu0 0.0
    %1339 = vmatpush1.msra.mxu0 0.0
    %1340 = vmatprep.subr.mxu0 0.0
    %1341 = vmatpush1.msra.mxu0 0.0
    %1342 = vmatprep.subr.mxu0 0.0
    %1343 = vmatpush1.msra.mxu0 0.0
    %1344 = vmatprep.subr.mxu0 0.0
    %1345 = vmatpush1.msra.mxu0 0.0
    %1346 = vmatprep.subr.mxu0 0.0
    %1347 = vmatpush1.msra.mxu0 0.0
    %1348 = vmatprep.subr.mxu0 0.0
    %1349 = vmatpush1.msra.mxu0 0.0
    %1350 = vmatprep.subr.mxu0 0.0
    %1351 = vmatpush1.msra.mxu0 0.0
    %1352 = vmatprep.subr.mxu0 0.0
    %1353 = vmatpush1.msra.mxu0 0.0
    %1354 = vmatprep.subr.mxu0 0.0
    %1355 = vmatpush1.msra.mxu0 0.0
    %1356 = vmatprep.subr.mxu0 0.0
    %1357 = vmatpush1.msra.mxu0 0.0
    %1358 = vmatprep.subr.mxu0 0.0
    %1359 = vmatpush1.msra.mxu0 0.0
    %1360 = vmatprep.subr.mxu0 0.0
    %1361 = vmatpush1.msra.mxu0 0.0
    %1362 = vmatprep.mubr.f32.mxu0 0.0
    %1363 = vmatmul.mubr.f32.gmra.mrb[0].mxu0 %v1297
    %v1364 = vpop.f32.mrb[0].mxu0
    %v1365 = vadd.f32 0.0, %v1364
    %v1366 = vpop.f32.mrb[0].mxu0
    %1367 = vdwg.mxu0
    %v1368 = vrcp.pop %v1365
    %v1369 = vmul.f32 %v1368, 0.0078125
    %1370 = vmatprep.subr.mxu0 0.0
    %1371 = vmatpush1.xpose.msra.mxu0 %v619
    %1372 = vmatprep.subr.mxu0 0.0
    %1373 = vmatpush1.xpose.msra.mxu0 %v621
    %1374 = vmatprep.subr.mxu0 0.0
    %1375 = vmatpush1.xpose.msra.mxu0 %v623
    %1376 = vmatprep.subr.mxu0 0.0
    %1377 = vmatpush1.xpose.msra.mxu0 %v625
    %1378 = vmatprep.subr.mxu0 0.0
    %1379 = vmatpush1.xpose.msra.mxu0 %v627
    %1380 = vmatprep.subr.mxu0 0.0
    %1381 = vmatpush1.xpose.msra.mxu0 %v629
    %1382 = vmatprep.subr.mxu0 0.0
    %1383 = vmatpush1.xpose.msra.mxu0 %v631
    %1384 = vmatprep.subr.mxu0 0.0
    %1385 = vmatpush1.xpose.msra.mxu0 %v633
    %1386 = vmatprep.subr.mxu0 0.0
    %1387 = vmatpush1.xpose.msra.mxu0 %v635
    %1388 = vmatprep.subr.mxu0 0.0
    %1389 = vmatpush1.xpose.msra.mxu0 %v637
    %1390 = vmatprep.subr.mxu0 0.0
    %1391 = vmatpush1.xpose.msra.mxu0 %v639
    %1392 = vmatprep.subr.mxu0 0.0
    %1393 = vmatpush1.xpose.msra.mxu0 %v641
    %1394 = vmatprep.subr.mxu0 0.0
    %1395 = vmatpush1.xpose.msra.mxu0 %v643
    %1396 = vmatprep.subr.mxu0 0.0
    %1397 = vmatpush1.xpose.msra.mxu0 %v645
    %1398 = vmatprep.subr.mxu0 0.0
    %1399 = vmatpush1.xpose.msra.mxu0 %v647
    %1400 = vmatprep.subr.mxu0 0.0
    %1401 = vmatpush1.xpose.msra.mxu0 %v649
    %1402 = vmatprep.subr.mxu0 0.0
    %1403 = vmatpush1.xpose.msra.mxu0 0.0
    %1404 = vmatprep.subr.mxu0 0.0
    %1405 = vmatpush1.xpose.msra.mxu0 0.0
    %1406 = vmatprep.subr.mxu0 0.0
    %1407 = vmatpush1.xpose.msra.mxu0 0.0
    %1408 = vmatprep.subr.mxu0 0.0
    %1409 = vmatpush1.xpose.msra.mxu0 0.0
    %1410 = vmatprep.subr.mxu0 0.0
    %1411 = vmatpush1.xpose.msra.mxu0 0.0
    %1412 = vmatprep.subr.mxu0 0.0
    %1413 = vmatpush1.xpose.msra.mxu0 0.0
    %1414 = vmatprep.subr.mxu0 0.0
    %1415 = vmatpush1.xpose.msra.mxu0 0.0
    %1416 = vmatprep.subr.mxu0 0.0
    %1417 = vmatpush1.xpose.msra.mxu0 0.0
    %1418 = vmatprep.subr.mxu0 0.0
    %1419 = vmatpush1.xpose.msra.mxu0 0.0
    %1420 = vmatprep.subr.mxu0 0.0
    %1421 = vmatpush1.xpose.msra.mxu0 0.0
    %1422 = vmatprep.subr.mxu0 0.0
    %1423 = vmatpush1.xpose.msra.mxu0 0.0
    %1424 = vmatprep.subr.mxu0 0.0
    %1425 = vmatpush1.xpose.msra.mxu0 0.0
    %1426 = vmatprep.subr.mxu0 0.0
    %1427 = vmatpush1.xpose.msra.mxu0 0.0
    %1428 = vmatprep.subr.mxu0 0.0
    %1429 = vmatpush1.xpose.msra.mxu0 0.0
    %1430 = vmatprep.subr.mxu0 0.0
    %1431 = vmatpush1.xpose.msra.mxu0 0.0
    %1432 = vmatprep.subr.mxu0 0.0
    %1433 = vmatpush1.xpose.msra.mxu0 0.0
    %1434 = vmatprep.mubr.f32.mxu0 0.0
    %1435 = vmatmul.mubr.f32.gmra.mrb[0].mxu0 %v1369
    %v1436 = vpop.f32.mrb[0].mxu0
    %v1437 = vadd.f32 0.0, %v1436
    %v1438 = vpop.f32.mrb[0].mxu0
    %1439 = vdwg.mxu0
    %v1440 = vrcp.pop %v1437
    %v1441 = vmul.f32 %v1440, 0.0078125
    %1442 = vmatprep.subr.mxu0 0.0
    %1443 = vmatpush1.msra.mxu0 %v619
    %1444 = vmatprep.subr.mxu0 0.0
    %1445 = vmatpush1.msra.mxu0 %v621
    %1446 = vmatprep.subr.mxu0 0.0
    %1447 = vmatpush1.msra.mxu0 %v623
    %1448 = vmatprep.subr.mxu0 0.0
    %1449 = vmatpush1.msra.mxu0 %v625
    %1450 = vmatprep.subr.mxu0 0.0
    %1451 = vmatpush1.msra.mxu0 %v627
    %1452 = vmatprep.subr.mxu0 0.0
    %1453 = vmatpush1.msra.mxu0 %v629
    %1454 = vmatprep.subr.mxu0 0.0
    %1455 = vmatpush1.msra.mxu0 %v631
    %1456 = vmatprep.subr.mxu0 0.0
    %1457 = vmatpush1.msra.mxu0 %v633
    %1458 = vmatprep.subr.mxu0 0.0
    %1459 = vmatpush1.msra.mxu0 %v635
    %1460 = vmatprep.subr.mxu0 0.0
    %1461 = vmatpush1.msra.mxu0 %v637
    %1462 = vmatprep.subr.mxu0 0.0
    %1463 = vmatpush1.msra.mxu0 %v639
    %1464 = vmatprep.subr.mxu0 0.0
    %1465 = vmatpush1.msra.mxu0 %v641
    %1466 = vmatprep.subr.mxu0 0.0
    %1467 = vmatpush1.msra.mxu0 %v643
    %1468 = vmatprep.subr.mxu0 0.0
    %1469 = vmatpush1.msra.mxu0 %v645
    %1470 = vmatprep.subr.mxu0 0.0
    %1471 = vmatpush1.msra.mxu0 %v647
    %1472 = vmatprep.subr.mxu0 0.0
    %1473 = vmatpush1.msra.mxu0 %v649
    %1474 = vmatprep.subr.mxu0 0.0
    %1475 = vmatpush1.msra.mxu0 0.0
    %1476 = vmatprep.subr.mxu0 0.0
    %1477 = vmatpush1.msra.mxu0 0.0
    %1478 = vmatprep.subr.mxu0 0.0
    %1479 = vmatpush1.msra.mxu0 0.0
    %1480 = vmatprep.subr.mxu0 0.0
    %1481 = vmatpush1.msra.mxu0 0.0
    %1482 = vmatprep.subr.mxu0 0.0
    %1483 = vmatpush1.msra.mxu0 0.0
    %1484 = vmatprep.subr.mxu0 0.0
    %1485 = vmatpush1.msra.mxu0 0.0
    %1486 = vmatprep.subr.mxu0 0.0
    %1487 = vmatpush1.msra.mxu0 0.0
    %1488 = vmatprep.subr.mxu0 0.0
    %1489 = vmatpush1.msra.mxu0 0.0
    %1490 = vmatprep.subr.mxu0 0.0
    %1491 = vmatpush1.msra.mxu0 0.0
    %1492 = vmatprep.subr.mxu0 0.0
    %1493 = vmatpush1.msra.mxu0 0.0
    %1494 = vmatprep.subr.mxu0 0.0
    %1495 = vmatpush1.msra.mxu0 0.0
    %1496 = vmatprep.subr.mxu0 0.0
    %1497 = vmatpush1.msra.mxu0 0.0
    %1498 = vmatprep.subr.mxu0 0.0
    %1499 = vmatpush1.msra.mxu0 0.0
    %1500 = vmatprep.subr.mxu0 0.0
    %1501 = vmatpush1.msra.mxu0 0.0
    %1502 = vmatprep.subr.mxu0 0.0
    %1503 = vmatpush1.msra.mxu0 0.0
    %1504 = vmatprep.subr.mxu0 0.0
    %1505 = vmatpush1.msra.mxu0 0.0
    %1506 = vmatprep.mubr.f32.mxu0 0.0
    %1507 = vmatmul.mubr.f32.gmra.mrb[0].mxu0 %v1441
    %v1508 = vpop.f32.mrb[0].mxu0
    %v1509 = vadd.f32 0.0, %v1508
    %v1510 = vpop.f32.mrb[0].mxu0
    %1511 = vdwg.mxu0
    %v1512 = vrcp.pop %v1509
    %v1513 = vmul.f32 %v1512, 0.0078125
    %1514 = vmatprep.subr.mxu0 0.0
    %1515 = vmatpush1.xpose.msra.mxu0 %v619
    %1516 = vmatprep.subr.mxu0 0.0
    %1517 = vmatpush1.xpose.msra.mxu0 %v621
    %1518 = vmatprep.subr.mxu0 0.0
    %1519 = vmatpush1.xpose.msra.mxu0 %v623
    %1520 = vmatprep.subr.mxu0 0.0
    %1521 = vmatpush1.xpose.msra.mxu0 %v625
    %1522 = vmatprep.subr.mxu0 0.0
    %1523 = vmatpush1.xpose.msra.mxu0 %v627
    %1524 = vmatprep.subr.mxu0 0.0
    %1525 = vmatpush1.xpose.msra.mxu0 %v629
    %1526 = vmatprep.subr.mxu0 0.0
    %1527 = vmatpush1.xpose.msra.mxu0 %v631
    %1528 = vmatprep.subr.mxu0 0.0
    %1529 = vmatpush1.xpose.msra.mxu0 %v633
    %1530 = vmatprep.subr.mxu0 0.0
    %1531 = vmatpush1.xpose.msra.mxu0 %v635
    %1532 = vmatprep.subr.mxu0 0.0
    %1533 = vmatpush1.xpose.msra.mxu0 %v637
    %1534 = vmatprep.subr.mxu0 0.0
    %1535 = vmatpush1.xpose.msra.mxu0 %v639
    %1536 = vmatprep.subr.mxu0 0.0
    %1537 = vmatpush1.xpose.msra.mxu0 %v641
    %1538 = vmatprep.subr.mxu0 0.0
    %1539 = vmatpush1.xpose.msra.mxu0 %v643
    %1540 = vmatprep.subr.mxu0 0.0
    %1541 = vmatpush1.xpose.msra.mxu0 %v645
    %1542 = vmatprep.subr.mxu0 0.0
    %1543 = vmatpush1.xpose.msra.mxu0 %v647
    %1544 = vmatprep.subr.mxu0 0.0
    %1545 = vmatpush1.xpose.msra.mxu0 %v649
    %1546 = vmatprep.subr.mxu0 0.0
    %1547 = vmatpush1.xpose.msra.mxu0 0.0
    %1548 = vmatprep.subr.mxu0 0.0
    %1549 = vmatpush1.xpose.msra.mxu0 0.0
    %1550 = vmatprep.subr.mxu0 0.0
    %1551 = vmatpush1.xpose.msra.mxu0 0.0
    %1552 = vmatprep.subr.mxu0 0.0
    %1553 = vmatpush1.xpose.msra.mxu0 0.0
    %1554 = vmatprep.subr.mxu0 0.0
    %1555 = vmatpush1.xpose.msra.mxu0 0.0
    %1556 = vmatprep.subr.mxu0 0.0
    %1557 = vmatpush1.xpose.msra.mxu0 0.0
    %1558 = vmatprep.subr.mxu0 0.0
    %1559 = vmatpush1.xpose.msra.mxu0 0.0
    %1560 = vmatprep.subr.mxu0 0.0
    %1561 = vmatpush1.xpose.msra.mxu0 0.0
    %1562 = vmatprep.subr.mxu0 0.0
    %1563 = vmatpush1.xpose.msra.mxu0 0.0
    %1564 = vmatprep.subr.mxu0 0.0
    %1565 = vmatpush1.xpose.msra.mxu0 0.0
    %1566 = vmatprep.subr.mxu0 0.0
    %1567 = vmatpush1.xpose.msra.mxu0 0.0
    %1568 = vmatprep.subr.mxu0 0.0
    %1569 = vmatpush1.xpose.msra.mxu0 0.0
    %1570 = vmatprep.subr.mxu0 0.0
    %1571 = vmatpush1.xpose.msra.mxu0 0.0
    %1572 = vmatprep.subr.mxu0 0.0
    %1573 = vmatpush1.xpose.msra.mxu0 0.0
    %1574 = vmatprep.subr.mxu0 0.0
    %1575 = vmatpush1.xpose.msra.mxu0 0.0
    %1576 = vmatprep.subr.mxu0 0.0
    %1577 = vmatpush1.xpose.msra.mxu0 0.0
    %1578 = vmatprep.mubr.f32.mxu0 0.0
    %1579 = vmatmul.mubr.f32.gmra.mrb[0].mxu0 %v1513
    %v1580 = vpop.f32.mrb[0].mxu0
    %v1581 = vadd.f32 0.0, %v1580
    %v1582 = vpop.f32.mrb[0].mxu0
    %1583 = vdwg.mxu0
    %v1584 = vrcp.pop %v1581
    %v1585 = vmul.f32 %v1584, 0.0078125
    %1586 = vmatprep.subr.mxu0 0.0
    %1587 = vmatpush1.msra.mxu0 %v619
    %1588 = vmatprep.subr.mxu0 0.0
    %1589 = vmatpush1.msra.mxu0 %v621
    %1590 = vmatprep.subr.mxu0 0.0
    %1591 = vmatpush1.msra.mxu0 %v623
    %1592 = vmatprep.subr.mxu0 0.0
    %1593 = vmatpush1.msra.mxu0 %v625
    %1594 = vmatprep.subr.mxu0 0.0
    %1595 = vmatpush1.msra.mxu0 %v627
    %1596 = vmatprep.subr.mxu0 0.0
    %1597 = vmatpush1.msra.mxu0 %v629
    %1598 = vmatprep.subr.mxu0 0.0
    %1599 = vmatpush1.msra.mxu0 %v631
    %1600 = vmatprep.subr.mxu0 0.0
    %1601 = vmatpush1.msra.mxu0 %v633
    %1602 = vmatprep.subr.mxu0 0.0
    %1603 = vmatpush1.msra.mxu0 %v635
    %1604 = vmatprep.subr.mxu0 0.0
    %1605 = vmatpush1.msra.mxu0 %v637
    %1606 = vmatprep.subr.mxu0 0.0
    %1607 = vmatpush1.msra.mxu0 %v639
    %1608 = vmatprep.subr.mxu0 0.0
    %1609 = vmatpush1.msra.mxu0 %v641
    %1610 = vmatprep.subr.mxu0 0.0
    %1611 = vmatpush1.msra.mxu0 %v643
    %1612 = vmatprep.subr.mxu0 0.0
    %1613 = vmatpush1.msra.mxu0 %v645
    %1614 = vmatprep.subr.mxu0 0.0
    %1615 = vmatpush1.msra.mxu0 %v647
    %1616 = vmatprep.subr.mxu0 0.0
    %1617 = vmatpush1.msra.mxu0 %v649
    %1618 = vmatprep.subr.mxu0 0.0
    %1619 = vmatpush1.msra.mxu0 0.0
    %1620 = vmatprep.subr.mxu0 0.0
    %1621 = vmatpush1.msra.mxu0 0.0
    %1622 = vmatprep.subr.mxu0 0.0
    %1623 = vmatpush1.msra.mxu0 0.0
    %1624 = vmatprep.subr.mxu0 0.0
    %1625 = vmatpush1.msra.mxu0 0.0
    %1626 = vmatprep.subr.mxu0 0.0
    %1627 = vmatpush1.msra.mxu0 0.0
    %1628 = vmatprep.subr.mxu0 0.0
    %1629 = vmatpush1.msra.mxu0 0.0
    %1630 = vmatprep.subr.mxu0 0.0
    %1631 = vmatpush1.msra.mxu0 0.0
    %1632 = vmatprep.subr.mxu0 0.0
    %1633 = vmatpush1.msra.mxu0 0.0
    %1634 = vmatprep.subr.mxu0 0.0
    %1635 = vmatpush1.msra.mxu0 0.0
    %1636 = vmatprep.subr.mxu0 0.0
    %1637 = vmatpush1.msra.mxu0 0.0
    %1638 = vmatprep.subr.mxu0 0.0
    %1639 = vmatpush1.msra.mxu0 0.0
    %1640 = vmatprep.subr.mxu0 0.0
    %1641 = vmatpush1.msra.mxu0 0.0
    %1642 = vmatprep.subr.mxu0 0.0
    %1643 = vmatpush1.msra.mxu0 0.0
    %1644 = vmatprep.subr.mxu0 0.0
    %1645 = vmatpush1.msra.mxu0 0.0
    %1646 = vmatprep.subr.mxu0 0.0
    %1647 = vmatpush1.msra.mxu0 0.0
    %1648 = vmatprep.subr.mxu0 0.0
    %1649 = vmatpush1.msra.mxu0 0.0
    %1650 = vmatprep.mubr.f32.mxu0 0.0
    %1651 = vmatmul.mubr.f32.gmra.mrb[0].mxu0 %v1585
    %v1652 = vpop.f32.mrb[0].mxu0
    %v1653 = vadd.f32 0.0, %v1652
    %v1654 = vpop.f32.mrb[0].mxu0
    %1655 = vdwg.mxu0
    %v1656 = vrcp.pop %v1653
    %v1657 = vmul.f32 %v1656, 0.0078125
    %1658 = vmatprep.subr.mxu0 0.0
    %1659 = vmatpush1.xpose.msra.mxu0 %v619
    %1660 = vmatprep.subr.mxu0 0.0
    %1661 = vmatpush1.xpose.msra.mxu0 %v621
    %1662 = vmatprep.subr.mxu0 0.0
    %1663 = vmatpush1.xpose.msra.mxu0 %v623
    %1664 = vmatprep.subr.mxu0 0.0
    %1665 = vmatpush1.xpose.msra.mxu0 %v625
    %1666 = vmatprep.subr.mxu0 0.0
    %1667 = vmatpush1.xpose.msra.mxu0 %v627
    %1668 = vmatprep.subr.mxu0 0.0
    %1669 = vmatpush1.xpose.msra.mxu0 %v629
    %1670 = vmatprep.subr.mxu0 0.0
    %1671 = vmatpush1.xpose.msra.mxu0 %v631
    %1672 = vmatprep.subr.mxu0 0.0
    %1673 = vmatpush1.xpose.msra.mxu0 %v633
    %1674 = vmatprep.subr.mxu0 0.0
    %1675 = vmatpush1.xpose.msra.mxu0 %v635
    %1676 = vmatprep.subr.mxu0 0.0
    %1677 = vmatpush1.xpose.msra.mxu0 %v637
    %1678 = vmatprep.subr.mxu0 0.0
    %1679 = vmatpush1.xpose.msra.mxu0 %v639
    %1680 = vmatprep.subr.mxu0 0.0
    %1681 = vmatpush1.xpose.msra.mxu0 %v641
    %1682 = vmatprep.subr.mxu0 0.0
    %1683 = vmatpush1.xpose.msra.mxu0 %v643
    %1684 = vmatprep.subr.mxu0 0.0
    %1685 = vmatpush1.xpose.msra.mxu0 %v645
    %1686 = vmatprep.subr.mxu0 0.0
    %1687 = vmatpush1.xpose.msra.mxu0 %v647
    %1688 = vmatprep.subr.mxu0 0.0
    %1689 = vmatpush1.xpose.msra.mxu0 %v649
    %1690 = vmatprep.subr.mxu0 0.0
    %1691 = vmatpush1.xpose.msra.mxu0 0.0
    %1692 = vmatprep.subr.mxu0 0.0
    %1693 = vmatpush1.xpose.msra.mxu0 0.0
    %1694 = vmatprep.subr.mxu0 0.0
    %1695 = vmatpush1.xpose.msra.mxu0 0.0
    %1696 = vmatprep.subr.mxu0 0.0
    %1697 = vmatpush1.xpose.msra.mxu0 0.0
    %1698 = vmatprep.subr.mxu0 0.0
    %1699 = vmatpush1.xpose.msra.mxu0 0.0
    %1700 = vmatprep.subr.mxu0 0.0
    %1701 = vmatpush1.xpose.msra.mxu0 0.0
    %1702 = vmatprep.subr.mxu0 0.0
    %1703 = vmatpush1.xpose.msra.mxu0 0.0
    %1704 = vmatprep.subr.mxu0 0.0
    %1705 = vmatpush1.xpose.msra.mxu0 0.0
    %1706 = vmatprep.subr.mxu0 0.0
    %1707 = vmatpush1.xpose.msra.mxu0 0.0
    %1708 = vmatprep.subr.mxu0 0.0
    %1709 = vmatpush1.xpose.msra.mxu0 0.0
    %1710 = vmatprep.subr.mxu0 0.0
    %1711 = vmatpush1.xpose.msra.mxu0 0.0
    %1712 = vmatprep.subr.mxu0 0.0
    %1713 = vmatpush1.xpose.msra.mxu0 0.0
    %1714 = vmatprep.subr.mxu0 0.0
    %1715 = vmatpush1.xpose.msra.mxu0 0.0
    %1716 = vmatprep.subr.mxu0 0.0
    %1717 = vmatpush1.xpose.msra.mxu0 0.0
    %1718 = vmatprep.subr.mxu0 0.0
    %1719 = vmatpush1.xpose.msra.mxu0 0.0
    %1720 = vmatprep.subr.mxu0 0.0
    %1721 = vmatpush1.xpose.msra.mxu0 0.0
    %1722 = vmatprep.mubr.f32.mxu0 0.0
    %1723 = vmatmul.mubr.f32.gmra.mrb[0].mxu0 %v1657
    %v1724 = vpop.f32.mrb[0].mxu0
    %v1725 = vadd.f32 0.0, %v1724
    %v1726 = vpop.f32.mrb[0].mxu0
    %1727 = vdwg.mxu0
    %v1728 = vrcp.pop %v1725
    %v1729 = vmul.f32 %v1728, 0.0078125
    %1730 = vmatprep.subr.mxu0 0.0
    %1731 = vmatpush1.msra.mxu0 %v619
    %1732 = vmatprep.subr.mxu0 0.0
    %1733 = vmatpush1.msra.mxu0 %v621
    %1734 = vmatprep.subr.mxu0 0.0
    %1735 = vmatpush1.msra.mxu0 %v623
    %1736 = vmatprep.subr.mxu0 0.0
    %1737 = vmatpush1.msra.mxu0 %v625
    %1738 = vmatprep.subr.mxu0 0.0
    %1739 = vmatpush1.msra.mxu0 %v627
    %1740 = vmatprep.subr.mxu0 0.0
    %1741 = vmatpush1.msra.mxu0 %v629
    %1742 = vmatprep.subr.mxu0 0.0
    %1743 = vmatpush1.msra.mxu0 %v631
    %1744 = vmatprep.subr.mxu0 0.0
    %1745 = vmatpush1.msra.mxu0 %v633
    %1746 = vmatprep.subr.mxu0 0.0
    %1747 = vmatpush1.msra.mxu0 %v635
    %1748 = vmatprep.subr.mxu0 0.0
    %1749 = vmatpush1.msra.mxu0 %v637
    %1750 = vmatprep.subr.mxu0 0.0
    %1751 = vmatpush1.msra.mxu0 %v639
    %1752 = vmatprep.subr.mxu0 0.0
    %1753 = vmatpush1.msra.mxu0 %v641
    %1754 = vmatprep.subr.mxu0 0.0
    %1755 = vmatpush1.msra.mxu0 %v643
    %1756 = vmatprep.subr.mxu0 0.0
    %1757 = vmatpush1.msra.mxu0 %v645
    %1758 = vmatprep.subr.mxu0 0.0
    %1759 = vmatpush1.msra.mxu0 %v647
    %1760 = vmatprep.subr.mxu0 0.0
    %1761 = vmatpush1.msra.mxu0 %v649
    %1762 = vmatprep.subr.mxu0 0.0
    %1763 = vmatpush1.msra.mxu0 0.0
    %1764 = vmatprep.subr.mxu0 0.0
    %1765 = vmatpush1.msra.mxu0 0.0
    %1766 = vmatprep.subr.mxu0 0.0
    %1767 = vmatpush1.msra.mxu0 0.0
    %1768 = vmatprep.subr.mxu0 0.0
    %1769 = vmatpush1.msra.mxu0 0.0
    %1770 = vmatprep.subr.mxu0 0.0
    %1771 = vmatpush1.msra.mxu0 0.0
    %1772 = vmatprep.subr.mxu0 0.0
    %1773 = vmatpush1.msra.mxu0 0.0
    %1774 = vmatprep.subr.mxu0 0.0
    %1775 = vmatpush1.msra.mxu0 0.0
    %1776 = vmatprep.subr.mxu0 0.0
    %1777 = vmatpush1.msra.mxu0 0.0
    %1778 = vmatprep.subr.mxu0 0.0
    %1779 = vmatpush1.msra.mxu0 0.0
    %1780 = vmatprep.subr.mxu0 0.0
    %1781 = vmatpush1.msra.mxu0 0.0
    %1782 = vmatprep.subr.mxu0 0.0
    %1783 = vmatpush1.msra.mxu0 0.0
    %1784 = vmatprep.subr.mxu0 0.0
    %1785 = vmatpush1.msra.mxu0 0.0
    %1786 = vmatprep.subr.mxu0 0.0
    %1787 = vmatpush1.msra.mxu0 0.0
    %1788 = vmatprep.subr.mxu0 0.0
    %1789 = vmatpush1.msra.mxu0 0.0
    %1790 = vmatprep.subr.mxu0 0.0
    %1791 = vmatpush1.msra.mxu0 0.0
    %1792 = vmatprep.subr.mxu0 0.0
    %1793 = vmatpush1.msra.mxu0 0.0
    %1794 = vmatprep.mubr.f32.mxu0 0.0
    %1795 = vmatmul.mubr.f32.gmra.mrb[0].mxu0 %v1729
    %v1796 = vpop.f32.mrb[0].mxu0
    %v1797 = vadd.f32 0.0, %v1796
    %v1798 = vpop.f32.mrb[0].mxu0
    %1799 = vdwg.mxu0
    %v1800 = vrcp.pop %v1797
    %v1801 = vmul.f32 %v1800, 0.0078125
    %1802 = vmatprep.subr.mxu0 0.0
    %1803 = vmatpush1.xpose.msra.mxu0 %v619
    %1804 = vmatprep.subr.mxu0 0.0
    %1805 = vmatpush1.xpose.msra.mxu0 %v621
    %1806 = vmatprep.subr.mxu0 0.0
    %1807 = vmatpush1.xpose.msra.mxu0 %v623
    %1808 = vmatprep.subr.mxu0 0.0
    %1809 = vmatpush1.xpose.msra.mxu0 %v625
    %1810 = vmatprep.subr.mxu0 0.0
    %1811 = vmatpush1.xpose.msra.mxu0 %v627
    %1812 = vmatprep.subr.mxu0 0.0
    %1813 = vmatpush1.xpose.msra.mxu0 %v629
    %1814 = vmatprep.subr.mxu0 0.0
    %1815 = vmatpush1.xpose.msra.mxu0 %v631
    %1816 = vmatprep.subr.mxu0 0.0
    %1817 = vmatpush1.xpose.msra.mxu0 %v633
    %1818 = vmatprep.subr.mxu0 0.0
    %1819 = vmatpush1.xpose.msra.mxu0 %v635
    %1820 = vmatprep.subr.mxu0 0.0
    %1821 = vmatpush1.xpose.msra.mxu0 %v637
    %1822 = vmatprep.subr.mxu0 0.0
    %1823 = vmatpush1.xpose.msra.mxu0 %v639
    %1824 = vmatprep.subr.mxu0 0.0
    %1825 = vmatpush1.xpose.msra.mxu0 %v641
    %1826 = vmatprep.subr.mxu0 0.0
    %1827 = vmatpush1.xpose.msra.mxu0 %v643
    %1828 = vmatprep.subr.mxu0 0.0
    %1829 = vmatpush1.xpose.msra.mxu0 %v645
    %1830 = vmatprep.subr.mxu0 0.0
    %1831 = vmatpush1.xpose.msra.mxu0 %v647
    %1832 = vmatprep.subr.mxu0 0.0
    %1833 = vmatpush1.xpose.msra.mxu0 %v649
    %1834 = vmatprep.subr.mxu0 0.0
    %1835 = vmatpush1.xpose.msra.mxu0 0.0
    %1836 = vmatprep.subr.mxu0 0.0
    %1837 = vmatpush1.xpose.msra.mxu0 0.0
    %1838 = vmatprep.subr.mxu0 0.0
    %1839 = vmatpush1.xpose.msra.mxu0 0.0
    %1840 = vmatprep.subr.mxu0 0.0
    %1841 = vmatpush1.xpose.msra.mxu0 0.0
    %1842 = vmatprep.subr.mxu0 0.0
    %1843 = vmatpush1.xpose.msra.mxu0 0.0
    %1844 = vmatprep.subr.mxu0 0.0
    %1845 = vmatpush1.xpose.msra.mxu0 0.0
    %1846 = vmatprep.subr.mxu0 0.0
    %1847 = vmatpush1.xpose.msra.mxu0 0.0
    %1848 = vmatprep.subr.mxu0 0.0
    %1849 = vmatpush1.xpose.msra.mxu0 0.0
    %1850 = vmatprep.subr.mxu0 0.0
    %1851 = vmatpush1.xpose.msra.mxu0 0.0
    %1852 = vmatprep.subr.mxu0 0.0
    %1853 = vmatpush1.xpose.msra.mxu0 0.0
    %1854 = vmatprep.subr.mxu0 0.0
    %1855 = vmatpush1.xpose.msra.mxu0 0.0
    %1856 = vmatprep.subr.mxu0 0.0
    %1857 = vmatpush1.xpose.msra.mxu0 0.0
    %1858 = vmatprep.subr.mxu0 0.0
    %1859 = vmatpush1.xpose.msra.mxu0 0.0
    %1860 = vmatprep.subr.mxu0 0.0
    %1861 = vmatpush1.xpose.msra.mxu0 0.0
    %1862 = vmatprep.subr.mxu0 0.0
    %1863 = vmatpush1.xpose.msra.mxu0 0.0
    %1864 = vmatprep.subr.mxu0 0.0
    %1865 = vmatpush1.xpose.msra.mxu0 0.0
    %1866 = vmatprep.mubr.f32.mxu0 0.0
    %1867 = vmatmul.mubr.f32.gmra.mrb[0].mxu0 %v1801
    %v1868 = vpop.f32.mrb[0].mxu0
    %v1869 = vadd.f32 0.0, %v1868
    %v1870 = vpop.f32.mrb[0].mxu0
    %1871 = vdwg.mxu0
    %v1872 = vrcp.pop %v1869
    %v1873 = vmul.f32 %v1872, 0.0078125
    %1874 = vmatprep.subr.mxu0 0.0
    %1875 = vmatpush1.msra.mxu0 %v619
    %1876 = vmatprep.subr.mxu0 0.0
    %1877 = vmatpush1.msra.mxu0 %v621
    %1878 = vmatprep.subr.mxu0 0.0
    %1879 = vmatpush1.msra.mxu0 %v623
    %1880 = vmatprep.subr.mxu0 0.0
    %1881 = vmatpush1.msra.mxu0 %v625
    %1882 = vmatprep.subr.mxu0 0.0
    %1883 = vmatpush1.msra.mxu0 %v627
    %1884 = vmatprep.subr.mxu0 0.0
    %1885 = vmatpush1.msra.mxu0 %v629
    %1886 = vmatprep.subr.mxu0 0.0
    %1887 = vmatpush1.msra.mxu0 %v631
    %1888 = vmatprep.subr.mxu0 0.0
    %1889 = vmatpush1.msra.mxu0 %v633
    %1890 = vmatprep.subr.mxu0 0.0
    %1891 = vmatpush1.msra.mxu0 %v635
    %1892 = vmatprep.subr.mxu0 0.0
    %1893 = vmatpush1.msra.mxu0 %v637
    %1894 = vmatprep.subr.mxu0 0.0
    %1895 = vmatpush1.msra.mxu0 %v639
    %1896 = vmatprep.subr.mxu0 0.0
    %1897 = vmatpush1.msra.mxu0 %v641
    %1898 = vmatprep.subr.mxu0 0.0
    %1899 = vmatpush1.msra.mxu0 %v643
    %1900 = vmatprep.subr.mxu0 0.0
    %1901 = vmatpush1.msra.mxu0 %v645
    %1902 = vmatprep.subr.mxu0 0.0
    %1903 = vmatpush1.msra.mxu0 %v647
    %1904 = vmatprep.subr.mxu0 0.0
    %1905 = vmatpush1.msra.mxu0 %v649
    %1906 = vmatprep.subr.mxu0 0.0
    %1907 = vmatpush1.msra.mxu0 0.0
    %1908 = vmatprep.subr.mxu0 0.0
    %1909 = vmatpush1.msra.mxu0 0.0
    %1910 = vmatprep.subr.mxu0 0.0
    %1911 = vmatpush1.msra.mxu0 0.0
    %1912 = vmatprep.subr.mxu0 0.0
    %1913 = vmatpush1.msra.mxu0 0.0
    %1914 = vmatprep.subr.mxu0 0.0
    %1915 = vmatpush1.msra.mxu0 0.0
    %1916 = vmatprep.subr.mxu0 0.0
    %1917 = vmatpush1.msra.mxu0 0.0
    %1918 = vmatprep.subr.mxu0 0.0
    %1919 = vmatpush1.msra.mxu0 0.0
    %1920 = vmatprep.subr.mxu0 0.0
    %1921 = vmatpush1.msra.mxu0 0.0
    %1922 = vmatprep.subr.mxu0 0.0
    %1923 = vmatpush1.msra.mxu0 0.0
    %1924 = vmatprep.subr.mxu0 0.0
    %1925 = vmatpush1.msra.mxu0 0.0
    %1926 = vmatprep.subr.mxu0 0.0
    %1927 = vmatpush1.msra.mxu0 0.0
    %1928 = vmatprep.subr.mxu0 0.0
    %1929 = vmatpush1.msra.mxu0 0.0
    %1930 = vmatprep.subr.mxu0 0.0
    %1931 = vmatpush1.msra.mxu0 0.0
    %1932 = vmatprep.subr.mxu0 0.0
    %1933 = vmatpush1.msra.mxu0 0.0
    %1934 = vmatprep.subr.mxu0 0.0
    %1935 = vmatpush1.msra.mxu0 0.0
    %1936 = vmatprep.subr.mxu0 0.0
    %1937 = vmatpush1.msra.mxu0 0.0
    %1938 = vmatprep.mubr.f32.mxu0 0.0
    %1939 = vmatmul.mubr.f32.gmra.mrb[0].mxu0 %v1873
    %v1940 = vpop.f32.mrb[0].mxu0
    %v1941 = vadd.f32 0.0, %v1940
    %v1942 = vpop.f32.mrb[0].mxu0
    %1943 = vdwg.mxu0
    %v1944 = vrcp.pop %v1941
    %v1945 = vmul.f32 %v1944, 0.0078125
    %1946 = vmatprep.subr.mxu0 0.0
    %1947 = vmatpush1.xpose.msra.mxu0 %v619
    %1948 = vmatprep.subr.mxu0 0.0
    %1949 = vmatpush1.xpose.msra.mxu0 %v621
    %1950 = vmatprep.subr.mxu0 0.0
    %1951 = vmatpush1.xpose.msra.mxu0 %v623
    %1952 = vmatprep.subr.mxu0 0.0
    %1953 = vmatpush1.xpose.msra.mxu0 %v625
    %1954 = vmatprep.subr.mxu0 0.0
    %1955 = vmatpush1.xpose.msra.mxu0 %v627
    %1956 = vmatprep.subr.mxu0 0.0
    %1957 = vmatpush1.xpose.msra.mxu0 %v629
    %1958 = vmatprep.subr.mxu0 0.0
    %1959 = vmatpush1.xpose.msra.mxu0 %v631
    %1960 = vmatprep.subr.mxu0 0.0
    %1961 = vmatpush1.xpose.msra.mxu0 %v633
    %1962 = vmatprep.subr.mxu0 0.0
    %1963 = vmatpush1.xpose.msra.mxu0 %v635
    %1964 = vmatprep.subr.mxu0 0.0
    %1965 = vmatpush1.xpose.msra.mxu0 %v637
    %1966 = vmatprep.subr.mxu0 0.0
    %1967 = vmatpush1.xpose.msra.mxu0 %v639
    %1968 = vmatprep.subr.mxu0 0.0
    %1969 = vmatpush1.xpose.msra.mxu0 %v641
    %1970 = vmatprep.subr.mxu0 0.0
    %1971 = vmatpush1.xpose.msra.mxu0 %v643
    %1972 = vmatprep.subr.mxu0 0.0
    %1973 = vmatpush1.xpose.msra.mxu0 %v645
    %1974 = vmatprep.subr.mxu0 0.0
    %1975 = vmatpush1.xpose.msra.mxu0 %v647
    %1976 = vmatprep.subr.mxu0 0.0
    %1977 = vmatpush1.xpose.msra.mxu0 %v649
    %1978 = vmatprep.subr.mxu0 0.0
    %1979 = vmatpush1.xpose.msra.mxu0 0.0
    %1980 = vmatprep.subr.mxu0 0.0
    %1981 = vmatpush1.xpose.msra.mxu0 0.0
    %1982 = vmatprep.subr.mxu0 0.0
    %1983 = vmatpush1.xpose.msra.mxu0 0.0
    %1984 = vmatprep.subr.mxu0 0.0
    %1985 = vmatpush1.xpose.msra.mxu0 0.0
    %1986 = vmatprep.subr.mxu0 0.0
    %1987 = vmatpush1.xpose.msra.mxu0 0.0
    %1988 = vmatprep.subr.mxu0 0.0
    %1989 = vmatpush1.xpose.msra.mxu0 0.0
    %1990 = vmatprep.subr.mxu0 0.0
    %1991 = vmatpush1.xpose.msra.mxu0 0.0
    %1992 = vmatprep.subr.mxu0 0.0
    %1993 = vmatpush1.xpose.msra.mxu0 0.0
    %1994 = vmatprep.subr.mxu0 0.0
    %1995 = vmatpush1.xpose.msra.mxu0 0.0
    %1996 = vmatprep.subr.mxu0 0.0
    %1997 = vmatpush1.xpose.msra.mxu0 0.0
    %1998 = vmatprep.subr.mxu0 0.0
    %1999 = vmatpush1.xpose.msra.mxu0 0.0
    %2000 = vmatprep.subr.mxu0 0.0
    %2001 = vmatpush1.xpose.msra.mxu0 0.0
    %2002 = vmatprep.subr.mxu0 0.0
    %2003 = vmatpush1.xpose.msra.mxu0 0.0
    %2004 = vmatprep.subr.mxu0 0.0
    %2005 = vmatpush1.xpose.msra.mxu0 0.0
    %2006 = vmatprep.subr.mxu0 0.0
    %2007 = vmatpush1.xpose.msra.mxu0 0.0
    %2008 = vmatprep.subr.mxu0 0.0
    %2009 = vmatpush1.xpose.msra.mxu0 0.0
    %2010 = vmatprep.mubr.f32.mxu0 0.0
    %2011 = vmatmul.mubr.f32.gmra.mrb[0].mxu0 %v1945
    %v2012 = vpop.f32.mrb[0].mxu0
    %v2013 = vadd.f32 0.0, %v2012
    %v2014 = vpop.f32.mrb[0].mxu0
    %2015 = vdwg.mxu0
    %v2016 = vrcp.pop %v2013
    %v2017 = vmul.f32 %v2016, 0.0078125
    %2018 = vmatprep.subr.mxu0 0.0
    %2019 = vmatpush1.msra.mxu0 %v619
    %2020 = vmatprep.subr.mxu0 0.0
    %2021 = vmatpush1.msra.mxu0 %v621
    %2022 = vmatprep.subr.mxu0 0.0
    %2023 = vmatpush1.msra.mxu0 %v623
    %2024 = vmatprep.subr.mxu0 0.0
    %2025 = vmatpush1.msra.mxu0 %v625
    %2026 = vmatprep.subr.mxu0 0.0
    %2027 = vmatpush1.msra.mxu0 %v627
    %2028 = vmatprep.subr.mxu0 0.0
    %2029 = vmatpush1.msra.mxu0 %v629
    %2030 = vmatprep.subr.mxu0 0.0
    %2031 = vmatpush1.msra.mxu0 %v631
    %2032 = vmatprep.subr.mxu0 0.0
    %2033 = vmatpush1.msra.mxu0 %v633
    %2034 = vmatprep.subr.mxu0 0.0
    %2035 = vmatpush1.msra.mxu0 %v635
    %2036 = vmatprep.subr.mxu0 0.0
    %2037 = vmatpush1.msra.mxu0 %v637
    %2038 = vmatprep.subr.mxu0 0.0
    %2039 = vmatpush1.msra.mxu0 %v639
    %2040 = vmatprep.subr.mxu0 0.0
    %2041 = vmatpush1.msra.mxu0 %v641
    %2042 = vmatprep.subr.mxu0 0.0
    %2043 = vmatpush1.msra.mxu0 %v643
    %2044 = vmatprep.subr.mxu0 0.0
    %2045 = vmatpush1.msra.mxu0 %v645
    %2046 = vmatprep.subr.mxu0 0.0
    %2047 = vmatpush1.msra.mxu0 %v647
    %2048 = vmatprep.subr.mxu0 0.0
    %2049 = vmatpush1.msra.mxu0 %v649
    %2050 = vmatprep.subr.mxu0 0.0
    %2051 = vmatpush1.msra.mxu0 0.0
    %2052 = vmatprep.subr.mxu0 0.0
    %2053 = vmatpush1.msra.mxu0 0.0
    %2054 = vmatprep.subr.mxu0 0.0
    %2055 = vmatpush1.msra.mxu0 0.0
    %2056 = vmatprep.subr.mxu0 0.0
    %2057 = vmatpush1.msra.mxu0 0.0
    %2058 = vmatprep.subr.mxu0 0.0
    %2059 = vmatpush1.msra.mxu0 0.0
    %2060 = vmatprep.subr.mxu0 0.0
    %2061 = vmatpush1.msra.mxu0 0.0
    %2062 = vmatprep.subr.mxu0 0.0
    %2063 = vmatpush1.msra.mxu0 0.0
    %2064 = vmatprep.subr.mxu0 0.0
    %2065 = vmatpush1.msra.mxu0 0.0
    %2066 = vmatprep.subr.mxu0 0.0
    %2067 = vmatpush1.msra.mxu0 0.0
    %2068 = vmatprep.subr.mxu0 0.0
    %2069 = vmatpush1.msra.mxu0 0.0
    %2070 = vmatprep.subr.mxu0 0.0
    %2071 = vmatpush1.msra.mxu0 0.0
    %2072 = vmatprep.subr.mxu0 0.0
    %2073 = vmatpush1.msra.mxu0 0.0
    %2074 = vmatprep.subr.mxu0 0.0
    %2075 = vmatpush1.msra.mxu0 0.0
    %2076 = vmatprep.subr.mxu0 0.0
    %2077 = vmatpush1.msra.mxu0 0.0
    %2078 = vmatprep.subr.mxu0 0.0
    %2079 = vmatpush1.msra.mxu0 0.0
    %2080 = vmatprep.subr.mxu0 0.0
    %2081 = vmatpush1.msra.mxu0 0.0
    %2082 = vmatprep.mubr.f32.mxu0 0.0
    %2083 = vmatmul.mubr.f32.gmra.mrb[0].mxu0 %v2017
    %v2084 = vpop.f32.mrb[0].mxu0
    %v2085 = vadd.f32 0.0, %v2084
    %v2086 = vpop.f32.mrb[0].mxu0
    %2087 = vdwg.mxu0
    %v2088 = vrcp.pop %v2085
    %v2089 = vmul.f32 %v2088, 0.0078125
    %v2090 = vmul.f32 %v586, %v619
    %v2091 = vmul.f32 %v587, %v621
    %v2092 = vmul.f32 %v588, %v623
    %v2093 = vmul.f32 %v589, %v625
    %v2094 = vmul.f32 %v590, %v627
    %v2095 = vmul.f32 %v591, %v629
    %v2096 = vmul.f32 %v592, %v631
    %v2097 = vmul.f32 %v593, %v633
    %v2098 = vmul.f32 %v594, %v635
    %v2099 = vmul.f32 %v595, %v637
    %v2100 = vmul.f32 %v596, %v639
    %v2101 = vmul.f32 %v597, %v641
    %v2102 = vmul.f32 %v598, %v643
    %v2103 = vmul.f32 %v599, %v645
    %v2104 = vmul.f32 %v600, %v647
    %v2105 = vmul.f32 %v601, %v649
    %2106 = vmatprep.subr.mxu0 0.0
    %2107 = vmatpush1.msra.mxu0 %v2090
    %2108 = vmatprep.subr.mxu0 0.0
    %2109 = vmatpush1.msra.mxu0 %v2091
    %2110 = vmatprep.subr.mxu0 0.0
    %2111 = vmatpush1.msra.mxu0 %v2092
    %2112 = vmatprep.subr.mxu0 0.0
    %2113 = vmatpush1.msra.mxu0 %v2093
    %2114 = vmatprep.subr.mxu0 0.0
    %2115 = vmatpush1.msra.mxu0 %v2094
    %2116 = vmatprep.subr.mxu0 0.0
    %2117 = vmatpush1.msra.mxu0 %v2095
    %2118 = vmatprep.subr.mxu0 0.0
    %2119 = vmatpush1.msra.mxu0 %v2096
    %2120 = vmatprep.subr.mxu0 0.0
    %2121 = vmatpush1.msra.mxu0 %v2097
    %2122 = vmatprep.subr.mxu0 0.0
    %2123 = vmatpush1.msra.mxu0 %v2098
    %2124 = vmatprep.subr.mxu0 0.0
    %2125 = vmatpush1.msra.mxu0 %v2099
    %2126 = vmatprep.subr.mxu0 0.0
    %2127 = vmatpush1.msra.mxu0 %v2100
    %2128 = vmatprep.subr.mxu0 0.0
    %2129 = vmatpush1.msra.mxu0 %v2101
    %2130 = vmatprep.subr.mxu0 0.0
    %2131 = vmatpush1.msra.mxu0 %v2102
    %2132 = vmatprep.subr.mxu0 0.0
    %2133 = vmatpush1.msra.mxu0 %v2103
    %2134 = vmatprep.subr.mxu0 0.0
    %2135 = vmatpush1.msra.mxu0 %v2104
    %2136 = vmatprep.subr.mxu0 0.0
    %2137 = vmatpush1.msra.mxu0 %v2105
    %2138 = vmatprep.subr.mxu0 0.0
    %2139 = vmatpush1.msra.mxu0 0.0
    %2140 = vmatprep.subr.mxu0 0.0
    %2141 = vmatpush1.msra.mxu0 0.0
    %2142 = vmatprep.subr.mxu0 0.0
    %2143 = vmatpush1.msra.mxu0 0.0
    %2144 = vmatprep.subr.mxu0 0.0
    %2145 = vmatpush1.msra.mxu0 0.0
    %2146 = vmatprep.subr.mxu0 0.0
    %2147 = vmatpush1.msra.mxu0 0.0
    %2148 = vmatprep.subr.mxu0 0.0
    %2149 = vmatpush1.msra.mxu0 0.0
    %2150 = vmatprep.subr.mxu0 0.0
    %2151 = vmatpush1.msra.mxu0 0.0
    %2152 = vmatprep.subr.mxu0 0.0
    %2153 = vmatpush1.msra.mxu0 0.0
    %2154 = vmatprep.subr.mxu0 0.0
    %2155 = vmatpush1.msra.mxu0 0.0
    %2156 = vmatprep.subr.mxu0 0.0
    %2157 = vmatpush1.msra.mxu0 0.0
    %2158 = vmatprep.subr.mxu0 0.0
    %2159 = vmatpush1.msra.mxu0 0.0
    %2160 = vmatprep.subr.mxu0 0.0
    %2161 = vmatpush1.msra.mxu0 0.0
    %2162 = vmatprep.subr.mxu0 0.0
    %2163 = vmatpush1.msra.mxu0 0.0
    %2164 = vmatprep.subr.mxu0 0.0
    %2165 = vmatpush1.msra.mxu0 0.0
    %2166 = vmatprep.subr.mxu0 0.0
    %2167 = vmatpush1.msra.mxu0 0.0
    %2168 = vmatprep.subr.mxu0 0.0
    %2169 = vmatpush1.msra.mxu0 0.0
    %2170 = vmatprep.mubr.f32.mxu0 0.0
    %2171 = vmatmul.mubr.f32.gmra.mrb[0].mxu0 %v2017
    %v2172 = vpop.f32.mrb[0].mxu0
    %v2173 = vadd.f32 0.0, %v2172
    %v2174 = vpop.f32.mrb[0].mxu0
    %2175 = vdwg.mxu0
    %v2176 = vmul.f32 %v2173, %v2089
    %vm2177 = vcmask 1040384
    %v2178 = vsel %vm2177, %v2176, 0.0
    %2179 = vadd.xlane.f32.xlu0 %v2178
    %v2180 = vpop.xlane.xlu0 %2179
    %v2181 = vrot.slane %v2180, 4
    %v2182 = vadd.f32 %v2180, %v2181
    %v2183 = vrot.slane %v2182, 2
    %v2184 = vadd.f32 %v2182, %v2183
    %v2185 = vrot.slane %v2184, 1
    %v2186 = vadd.f32 %v2184, %v2185
    %s2187 = vtos %v2186
    %s2188 = scalar_lea.smem [#allocation2], 0
    %2189 = sst [smem:[%s2188]] %s2187
    // Predicated region
    $region10: #{tpu_custom_call.1} parent=1 // pred_check
      _
    $region11: #{tpu_custom_call.1} parent=1 // pred_check_branch
      %2191 = sbr.rel (0) target = $region13
    $region12: #{tpu_custom_call.1} parent=1 // pred_region
      %s2193 = ssub.s32 16, 16
      %2194 = vsyncadd [#allocation3], %s2193
      %2197 = dma.smem_to_hbm [#allocation2], 16, %s2, [#allocation3]
    $region13: #{tpu_custom_call.1} parent=1 // pred_fallthru
      _
    // Predicated region
    $region14: #{tpu_custom_call.1} parent=1 // pred_check
      _
    $region15: #{tpu_custom_call.1} parent=1 // pred_check_branch
      %2199 = sbr.rel (0) target = $region17
    $region16: #{tpu_custom_call.1} parent=1 // pred_region
      %2200 = dma.done [#allocation3], 16
    $region17: #{tpu_custom_call.1} parent=1 // pred_fallthru
      _
    %2201 = sfence
    %2202 = vsyncpa [#allocation3], 1

</llo_original>
